<compile_context>
chip_gen: v7x
topology: tpu7x:2x2x1
jax: 0.10.0
libtpu: 0.0.40
codegen_flags: <defaults>
</compile_context>

<pallas_src>
import functools

import jax
import jax.numpy as jnp
import numpy as np
from jax.experimental import pallas as pl
from jax.experimental.pallas import tpu as pltpu

# ----------------------------- problem sizes -----------------------------
NODE_FEATURES = 32      # must equal HIDDEN for the torch.where broadcast (asserted below)
HIDDEN = 32
BOND_FEATURES = 16
DEPTH = 3
N_NODES = 16
N_UNDIRECTED = 12
N_EDGES = 2 * N_UNDIRECTED
BATCH = 8               # graphs per call; packed 4-per-block onto a 2-point parallel grid


# ----------------------------- Pallas kernel -----------------------------
def _mpnn_kernel(depth,
                 x_ref, ea_ref, src_ref, dst_ref,
                 wix_ref, wie_ref, wh_ref, wox_ref, wom_ref, b_ref,
                 out_ref):
    f32, bf16 = jnp.float32, jnp.bfloat16
    n_blk = x_ref.shape[0]          # chunk * nodes_per_graph
    e_blk = ea_ref.shape[0]         # chunk * edges_per_graph

    x = x_ref[...]                  # (N_blk, F) f32
    ea = ea_ref[...]                # (E_blk, Bf) f32
    src = src_ref[...]              # (E_blk, 1) int32, block-local node ids
    dst = dst_ref[...]              # (1, E_blk) int32, block-local node ids
    b_i, b_h, b_o = b_ref[0:1, :], b_ref[1:2, :], b_ref[2:3, :]

    # Block-diagonal operators built in-register from the index vectors (only the tiny
    # int32 indices travel HBM->VMEM).  0/+-1 entries are exact in bf16 => native MXU path.
    node_col = jax.lax.broadcasted_iota(jnp.int32, (e_blk, n_blk), 1)
    s_gather = (node_col == src).astype(bf16)                       # (E_blk, N_blk)
    node_row = jax.lax.broadcasted_iota(jnp.int32, (n_blk, e_blk), 0)
    s_scatter = (node_row == dst).astype(bf16)                      # (N_blk, E_blk)

    # Fused per-depth message operator: m = A @ h with
    #   A[e, e'] = (dst[e'] == src[e]) - (e' == e ^ 1)    (paired directed edges: rev(e) == e^1)
    edge_row = jax.lax.broadcasted_iota(jnp.int32, (e_blk, 1), 0)
    edge_col = jax.lax.broadcasted_iota(jnp.int32, (e_blk, e_blk), 1)
    a_msg = ((dst == src).astype(f32)
             - (edge_col == (edge_row ^ 1)).astype(f32)).astype(bf16)   # (E_blk, E_blk)

    x_bf = x.astype(bf16)
    wh = wh_ref[...]                # (H, H) bf16, hoisted out of the depth loop

    # H_0 = relu(W_i([x[src] ; edge_attr])): project at the nodes first, then gather to
    # edges; the concat is folded into split matmuls.  bf16 MXU operands, f32 accumulation.
    xw = jnp.dot(x_bf, wix_ref[...], preferred_element_type=f32)               # (N_blk, H)
    eaw = jnp.dot(ea.astype(bf16), wie_ref[...], preferred_element_type=f32)   # (E_blk, H)
    h0 = jnp.dot(s_gather, xw.astype(bf16), preferred_element_type=f32) + eaw + b_i
    h = jnp.maximum(h0, 0.0)

    def body(_, h):
        # message + reverse-edge subtraction in one MXU matmul.
        m = jnp.dot(a_msg, h.astype(bf16), preferred_element_type=f32)         # (E_blk, H)
        # update(): relu(H_0 + W_h(M)); dropout = identity (eval mode)
        h_t = jnp.dot(m.astype(bf16), wh, preferred_element_type=f32) + b_h
        return jnp.maximum(h0 + h_t, 0.0)

    h = jax.lax.fori_loop(0, depth - 1, body, h, unroll=True)

    # Final node aggregation + zero-row fallback to x (summands >= 0 => == 0 test exact).
    m_node = jnp.dot(s_scatter, h.astype(bf16), preferred_element_type=f32)    # (N_blk, H)
    m_node = jnp.where(jnp.sum(m_node, axis=1, keepdims=True) == 0.0, x, m_node)

    # W_o([x ; M]) with the concat folded into split matmuls, then ReLU (dropout = identity).
    out = (jnp.dot(x_bf, wox_ref[...], preferred_element_type=f32)
           + jnp.dot(m_node.astype(bf16), wom_ref[...], preferred_element_type=f32)
           + b_o)
    out_ref[...] = jnp.maximum(out, 0.0)


# ----------------------------- wrapper -----------------------------
def bond_message_passing(x, edge_attr, edge_index, rev_edge_index, params,
                         depth=DEPTH, graphs_per_block=None):
    """x: (B,N,F) or (N,F); edge_attr: (B,E,Bf) or (E,Bf); edge_index: (B,2,E) or (2,E)."""
    squeeze = x.ndim == 2
    if squeeze:
        x, edge_attr = x[None], edge_attr[None]
        edge_index, rev_edge_index = edge_index[None], rev_edge_index[None]

    B, n_nodes, f = x.shape
    n_edges, bond_f = edge_attr.shape[1], edge_attr.shape[2]
    hidden = params["W_h"].shape[0]

    assert f == hidden, "torch.where(x, M) broadcast requires node_features == hidden_size"
    assert n_edges % 2 == 0 and n_edges >= 2

    # chemprop pairing: directed edges (2k, 2k+1) are mutual reverses -> rev(e) == e ^ 1.
    # Structural check runs only on concrete inputs (skipped under jit: no sync, no
    # TracerBoolConversionError).
    try:
        rev_np = np.asarray(rev_edge_index)
    except Exception:
        rev_np = None
    if rev_np is not None:
        expected = np.broadcast_to(np.arange(n_edges) ^ 1, rev_np.shape)
        assert np.array_equal(rev_np, expected), "expected paired reverse edges (rev(e) == e ^ 1)"

    # Two fat blocks by default: both v7x TensorCores get one; v5e/v6e only pay ~0.35 us
    # of extra per-step overhead for the second grid point.
    if graphs_per_block is None:
        graphs_per_block = B // 2 if (B % 2 == 0 and B > 1) else B
    chunk = graphs_per_block
    assert B % chunk == 0, "batch must be divisible by graphs_per_block"
    num_blocks = B // chunk
    n_blk, e_blk = chunk * n_nodes, chunk * n_edges

    # Flatten graphs onto the row axis, chunk graphs per grid block; node indices get a
    # per-graph offset so the in-kernel operators come out block-diagonal.
    x_in = x.reshape(num_blocks, n_blk, f).astype(jnp.float32)
    ea_in = edge_attr.reshape(num_blocks, e_blk, bond_f).astype(jnp.float32)
    offs = (jnp.arange(B, dtype=jnp.int32) % chunk) * n_nodes                # (B,)
    src_in = (edge_index[:, 0, :].astype(jnp.int32) + offs[:, None]).reshape(num_blocks, e_blk, 1)
    dst_in = (edge_index[:, 1, :].astype(jnp.int32) + offs[:, None]).reshape(num_blocks, 1, e_blk)

    # Split the concatenated weights (no in-VMEM concat) and cast MXU operands to bf16.
    w_i = params["W_i"].astype(jnp.bfloat16)
    w_ix, w_ie = w_i[:f], w_i[f:]
    w_h = params["W_h"].astype(jnp.bfloat16)
    w_o = params["W_o"].astype(jnp.bfloat16)
    w_ox, w_om = w_o[:f], w_o[f:]
    b_all = jnp.stack([params["b_i"], params["b_h"], params["b_o"]]).astype(jnp.float32)  # (3,H)

    kernel = functools.partial(_mpnn_kernel, depth)
    batched = lambda r, c: pl.BlockSpec((None, r, c), lambda i: (i, 0, 0))
    shared = lambda shape: pl.BlockSpec(shape, lambda i: (0, 0))

    out = pl.pallas_call(
        kernel,
        grid=(num_blocks,),
        out_shape=jax.ShapeDtypeStruct((num_blocks, n_blk, hidden), jnp.float32),
        in_specs=[
            batched(n_blk, f),          # x rows (chunk graphs stacked)
            batched(e_blk, bond_f),     # edge_attr rows
            batched(e_blk, 1),          # src (column vector, block-local node ids)
            batched(1, e_blk),          # dst (row vector, block-local node ids)
            shared((f, hidden)),        # W_i[:F]   bf16
            shared((bond_f, hidden)),   # W_i[F:]   bf16
            shared((hidden, hidden)),   # W_h       bf16
            shared((f, hidden)),        # W_o[:F]   bf16
            shared((hidden, hidden)),   # W_o[F:]   bf16
            shared((3, hidden)),        # [b_i; b_h; b_o]  f32
        ],
        out_specs=batched(n_blk, hidden),
        compiler_params=pltpu.CompilerParams(dimension_semantics=("parallel",)),
    )(x_in, ea_in, src_in, dst_in, w_ix, w_ie, w_h, w_ox, w_om, b_all)

    out = out.reshape(B, n_nodes, hidden)
    return out[0] if squeeze else out


# ----------------------------- pure-JAX references -----------------------------
def reference(x, edge_attr, edge_index, rev_edge_index, params, depth=DEPTH):
    """Exact f32 mirror of the PyTorch module forward (eval mode)."""
    mm = lambda a, w: jnp.dot(a, w, precision="highest")
    src, dst = edge_index[0], edge_index[1]
    relu = lambda t: jnp.maximum(t, 0.0)
    h0 = mm(jnp.concatenate([x[src], edge_attr], axis=1), params["W_i"]) + params["b_i"]
    h = relu(h0)
    for _ in range(1, depth):
        m_node = jax.ops.segment_sum(h, dst, num_segments=x.shape[0])
        m = m_node[src] - h[rev_edge_index]
        h = relu(h0 + mm(m, params["W_h"]) + params["b_h"])
    m_node = jax.ops.segment_sum(h, dst, num_segments=x.shape[0])
    m_node = jnp.where(m_node.sum(axis=1, keepdims=True) == 0.0, x, m_node)
    return relu(mm(jnp.concatenate([x, m_node], axis=1), params["W_o"]) + params["b_o"])


def reference_kernel_math(x, edge_attr, edge_index, params, depth=DEPTH):
    """Plain-XLA mirror of the kernel's exact arithmetic (bf16 MXU operands with f32
    accumulation, fused 0/+-1 operators) - isolates Pallas-mechanics bugs from rounding."""
    f32, bf16 = jnp.float32, jnp.bfloat16
    mm = lambda a, b: jnp.dot(a.astype(bf16), b.astype(bf16), preferred_element_type=f32)
    src, dst = edge_index[0], edge_index[1]
    n, e, f = x.shape[0], edge_attr.shape[0], x.shape[1]
    s_gather = (jnp.arange(n)[None, :] == src[:, None]).astype(f32)            # (E, N)
    s_scatter = (jnp.arange(n)[:, None] == dst[None, :]).astype(f32)           # (N, E)
    a_msg = ((dst[None, :] == src[:, None]).astype(f32)
             - (jnp.arange(e)[None, :] == (jnp.arange(e)[:, None] ^ 1)).astype(f32))
    w_i, w_h, w_o = params["W_i"], params["W_h"], params["W_o"]
    h0 = mm(s_gather, mm(x, w_i[:f])) + mm(edge_attr, w_i[f:]) + params["b_i"]
    h = jnp.maximum(h0, 0.0)
    for _ in range(1, depth):
        h = jnp.maximum(h0 + mm(mm(a_msg, h), w_h) + params["b_h"], 0.0)
    m_node = mm(s_scatter, h)
    m_node = jnp.where(m_node.sum(axis=1, keepdims=True) == 0.0, x, m_node)
    out = mm(x, w_o[:f]) + mm(m_node, w_o[f:]) + params["b_o"]
    return jnp.maximum(out, 0.0)


# ----------------------------- main -----------------------------
if __name__ == "__main__":
    key = jax.random.PRNGKey(0)
    ks = jax.random.split(key, 4)

    def make_graph(k):
        k1, k2, k3, k4 = jax.random.split(k, 4)
        u = jax.random.randint(k1, (N_UNDIRECTED,), 0, N_NODES)
        v = (u + 1 + jax.random.randint(k2, (N_UNDIRECTED,), 0, N_NODES - 1)) % N_NODES
        src = jnp.stack([u, v], axis=1).reshape(-1)       # paired directed edges (2k, 2k+1)
        dst = jnp.stack([v, u], axis=1).reshape(-1)
        edge_index = jnp.stack([src, dst]).astype(jnp.int32)               # (2, E)
        x = jax.random.normal(k3, (N_NODES, NODE_FEATURES), jnp.float32)
        ea = jax.random.normal(k4, (N_EDGES, BOND_FEATURES), jnp.float32)
        return x, ea, edge_index

    graphs = [make_graph(k) for k in jax.random.split(ks[0], BATCH)]
    x = jnp.stack([g[0] for g in graphs])                 # (B, N, F)
    edge_attr = jnp.stack([g[1] for g in graphs])         # (B, E, Bf)
    edge_index = jnp.stack([g[2] for g in graphs])        # (B, 2, E)
    rev_edge_index = jnp.broadcast_to(
        jnp.arange(N_EDGES, dtype=jnp.int32) ^ 1, (BATCH, N_EDGES))

    # Deterministic parameter init (synthetic, not a checkpoint), mirroring nn.Linear.
    def lin_init(k, fan_in, fan_out):
        bound = 1.0 / jnp.sqrt(fan_in)
        kw, kb = jax.random.split(k)
        w = jax.random.uniform(kw, (fan_in, fan_out), jnp.float32, -bound, bound)
        b = jax.random.uniform(kb, (fan_out,), jnp.float32, -bound, bound)
        return w, b

    w_i, b_i = lin_init(ks[1], NODE_FEATURES + BOND_FEATURES, HIDDEN)
    w_h, b_h = lin_init(ks[2], HIDDEN, HIDDEN)
    w_o, b_o = lin_init(ks[3], NODE_FEATURES + HIDDEN, HIDDEN)
    params = {"W_i": w_i, "b_i": b_i, "W_h": w_h, "b_h": b_h, "W_o": w_o, "b_o": b_o}

    out = bond_message_passing(x, edge_attr, edge_index, rev_edge_index, params)
    out = jax.block_until_ready(out)
    assert out.shape == (BATCH, N_NODES, HIDDEN)

    for b in range(BATCH):
        # Tight check: XLA mirror of the kernel's exact bf16-operand arithmetic.
        ref_tight = reference_kernel_math(x[b], edge_attr[b], edge_index[b], params)
        assert jnp.allclose(out[b], ref_tight, atol=2e-3, rtol=2e-3), \
            f"graph {b}: mismatch vs kernel-math reference"
        # Loose check: exact f32 mirror of the PyTorch module (bf16 operand/weight rounding
        # compounded through the depth-3 recursion is the only difference).
        ref_f32 = reference(x[b], edge_attr[b], edge_index[b], rev_edge_index[b], params)
        assert jnp.allclose(out[b], ref_f32, atol=1.5e-1, rtol=1e-1), \
            f"graph {b}: mismatch vs f32 reference"

    print("KERNEL_OK")
</pallas_src>

<mosaic_0001>
module attributes {stable_mosaic.version = 11 : i64} {
  func.func @_mpnn_kernel(%arg0: i32, %arg1: memref<1x64x32xf32, #tpu.memory_space<vmem>>, %arg2: memref<1x96x16xf32, #tpu.memory_space<vmem>>, %arg3: memref<1x96x1xi32, #tpu.memory_space<vmem>>, %arg4: memref<1x1x96xi32, #tpu.memory_space<vmem>>, %arg5: memref<32x32xbf16, #tpu.memory_space<vmem>>, %arg6: memref<16x32xbf16, #tpu.memory_space<vmem>>, %arg7: memref<32x32xbf16, #tpu.memory_space<vmem>>, %arg8: memref<32x32xbf16, #tpu.memory_space<vmem>>, %arg9: memref<32x32xbf16, #tpu.memory_space<vmem>>, %arg10: memref<3x32xf32, #tpu.memory_space<vmem>>, %arg11: memref<1x64x32xf32, #tpu.memory_space<vmem>>) attributes {dimension_semantics = [#tpu.dimension_semantics<parallel>], iteration_bounds = array<i64: 2>, scalar_prefetch = 0 : i64, scratch_operands = 0 : i64, tpu.core_type = #tpu.core_type<tc>, window_params = [{transform_indices = @transform_0, window_bounds = array<i64: 1, 64, 32>}, {transform_indices = @transform_1, window_bounds = array<i64: 1, 96, 16>}, {transform_indices = @transform_2, window_bounds = array<i64: 1, 96, 1>}, {transform_indices = @transform_3, window_bounds = array<i64: 1, 1, 96>}, {pipeline_mode = #tpu.pipeline_mode<synchronous>, transform_indices = @transform_4, window_bounds = array<i64: 32, 32>}, {pipeline_mode = #tpu.pipeline_mode<synchronous>, transform_indices = @transform_5, window_bounds = array<i64: 16, 32>}, {pipeline_mode = #tpu.pipeline_mode<synchronous>, transform_indices = @transform_6, window_bounds = array<i64: 32, 32>}, {pipeline_mode = #tpu.pipeline_mode<synchronous>, transform_indices = @transform_7, window_bounds = array<i64: 32, 32>}, {pipeline_mode = #tpu.pipeline_mode<synchronous>, transform_indices = @transform_8, window_bounds = array<i64: 32, 32>}, {pipeline_mode = #tpu.pipeline_mode<synchronous>, transform_indices = @transform_9, window_bounds = array<i64: 3, 32>}, {transform_indices = @transform_10, window_bounds = array<i64: 1, 64, 32>}]} {
    %c0 = arith.constant 0 : index
    %c0_0 = arith.constant 0 : index
    %c0_1 = arith.constant 0 : index
    %0 = vector.load %arg1[%c0, %c0_0, %c0_1] : memref<1x64x32xf32, #tpu.memory_space<vmem>>, vector<1x64x32xf32>
    %1 = vector.shape_cast %0 : vector<1x64x32xf32> to vector<64x32xf32>
    %c0_2 = arith.constant 0 : index
    %c0_3 = arith.constant 0 : index
    %c0_4 = arith.constant 0 : index
    %2 = vector.load %arg2[%c0_2, %c0_3, %c0_4] : memref<1x96x16xf32, #tpu.memory_space<vmem>>, vector<1x96x16xf32>
    %3 = vector.shape_cast %2 : vector<1x96x16xf32> to vector<96x16xf32>
    %c0_5 = arith.constant 0 : index
    %c0_6 = arith.constant 0 : index
    %c0_7 = arith.constant 0 : index
    %4 = vector.load %arg3[%c0_5, %c0_6, %c0_7] : memref<1x96x1xi32, #tpu.memory_space<vmem>>, vector<1x96x1xi32>
    %5 = vector.shape_cast %4 : vector<1x96x1xi32> to vector<96x1xi32>
    %c0_8 = arith.constant 0 : index
    %c0_9 = arith.constant 0 : index
    %c0_10 = arith.constant 0 : index
    %6 = vector.load %arg4[%c0_8, %c0_9, %c0_10] : memref<1x1x96xi32, #tpu.memory_space<vmem>>, vector<1x1x96xi32>
    %7 = vector.shape_cast %6 : vector<1x1x96xi32> to vector<1x96xi32>
    %c0_11 = arith.constant 0 : index
    %c0_12 = arith.constant 0 : index
    %8 = vector.load %arg10[%c0_11, %c0_12] : memref<3x32xf32, #tpu.memory_space<vmem>>, vector<1x32xf32>
    %c1 = arith.constant 1 : index
    %c0_13 = arith.constant 0 : index
    %9 = vector.load %arg10[%c1, %c0_13] : memref<3x32xf32, #tpu.memory_space<vmem>>, vector<1x32xf32>
    %c2 = arith.constant 2 : index
    %c0_14 = arith.constant 0 : index
    %10 = vector.load %arg10[%c2, %c0_14] : memref<3x32xf32, #tpu.memory_space<vmem>>, vector<1x32xf32>
    %11 = tpu.iota {dimensions = array<i32: 1>} : vector<96x64xi32>
    %12 = vector.broadcast %5 : vector<96x1xi32> to vector<96x64xi32>
    %13 = arith.cmpi eq, %11, %12 : vector<96x64xi32>
    %14 = arith.extui %13 : vector<96x64xi1> to vector<96x64xi32>
    %15 = arith.sitofp %14 : vector<96x64xi32> to vector<96x64xf32>
    %16 = arith.truncf %15 : vector<96x64xf32> to vector<96x64xbf16>
    %17 = tpu.iota {dimensions = array<i32: 0>} : vector<64x96xi32>
    %18 = vector.broadcast %7 : vector<1x96xi32> to vector<64x96xi32>
    %19 = arith.cmpi eq, %17, %18 : vector<64x96xi32>
    %20 = arith.extui %19 : vector<64x96xi1> to vector<64x96xi32>
    %21 = arith.sitofp %20 : vector<64x96xi32> to vector<64x96xf32>
    %22 = arith.truncf %21 : vector<64x96xf32> to vector<64x96xbf16>
    %23 = tpu.iota {dimensions = array<i32: 0>} : vector<96x1xi32>
    %24 = tpu.iota {dimensions = array<i32: 1>} : vector<96x96xi32>
    %25 = vector.broadcast %7 : vector<1x96xi32> to vector<96x96xi32>
    %26 = vector.broadcast %5 : vector<96x1xi32> to vector<96x96xi32>
    %27 = arith.cmpi eq, %25, %26 : vector<96x96xi32>
    %28 = arith.extui %27 : vector<96x96xi1> to vector<96x96xi32>
    %29 = arith.sitofp %28 : vector<96x96xi32> to vector<96x96xf32>
    %c1_i32 = arith.constant 1 : i32
    %30 = vector.broadcast %c1_i32 : i32 to vector<96x1xi32>
    %31 = arith.xori %23, %30 : vector<96x1xi32>
    %32 = vector.broadcast %31 : vector<96x1xi32> to vector<96x96xi32>
    %33 = arith.cmpi eq, %24, %32 : vector<96x96xi32>
    %34 = arith.extui %33 : vector<96x96xi1> to vector<96x96xi32>
    %35 = arith.sitofp %34 : vector<96x96xi32> to vector<96x96xf32>
    %36 = arith.subf %29, %35 : vector<96x96xf32>
    %37 = arith.truncf %36 : vector<96x96xf32> to vector<96x96xbf16>
    %38 = arith.truncf %1 : vector<64x32xf32> to vector<64x32xbf16>
    %c0_15 = arith.constant 0 : index
    %c0_16 = arith.constant 0 : index
    %39 = vector.load %arg7[%c0_15, %c0_16] : memref<32x32xbf16, #tpu.memory_space<vmem>>, vector<32x32xbf16>
    %c0_17 = arith.constant 0 : index
    %c0_18 = arith.constant 0 : index
    %40 = vector.load %arg5[%c0_17, %c0_18] : memref<32x32xbf16, #tpu.memory_space<vmem>>, vector<32x32xbf16>
    %cst = arith.constant dense<0.000000e+00> : vector<64x32xf32>
    %41 = tpu.matmul %38, %40, %cst {dimension_numbers = #tpu.dot_dimension_numbers<[1], [0], [0], [1], [0, 0, 1, 1], [], []>} : vector<64x32xbf16>, vector<32x32xbf16>, vector<64x32xf32> -> vector<64x32xf32>
    %42 = arith.truncf %3 : vector<96x16xf32> to vector<96x16xbf16>
    %c0_19 = arith.constant 0 : index
    %c0_20 = arith.constant 0 : index
    %43 = vector.load %arg6[%c0_19, %c0_20] : memref<16x32xbf16, #tpu.memory_space<vmem>>, vector<16x32xbf16>
    %cst_21 = arith.constant dense<0.000000e+00> : vector<96x32xf32>
    %44 = tpu.matmul %42, %43, %cst_21 {dimension_numbers = #tpu.dot_dimension_numbers<[1], [0], [0], [1], [0, 0, 1, 1], [], []>} : vector<96x16xbf16>, vector<16x32xbf16>, vector<96x32xf32> -> vector<96x32xf32>
    %45 = arith.truncf %41 : vector<64x32xf32> to vector<64x32xbf16>
    %cst_22 = arith.constant dense<0.000000e+00> : vector<96x32xf32>
    %46 = tpu.matmul %16, %45, %cst_22 {dimension_numbers = #tpu.dot_dimension_numbers<[1], [0], [0], [1], [0, 0, 1, 1], [], []>} : vector<96x64xbf16>, vector<64x32xbf16>, vector<96x32xf32> -> vector<96x32xf32>
    %47 = arith.addf %46, %44 : vector<96x32xf32>
    %48 = vector.broadcast %8 : vector<1x32xf32> to vector<96x32xf32>
    %49 = arith.addf %47, %48 : vector<96x32xf32>
    %cst_23 = arith.constant 0.000000e+00 : f32
    %50 = vector.broadcast %cst_23 : f32 to vector<96x32xf32>
    %51 = arith.maximumf %49, %50 : vector<96x32xf32>
    %c0_i32 = arith.constant 0 : i32
    %52 = arith.truncf %51 : vector<96x32xf32> to vector<96x32xbf16>
    %cst_24 = arith.constant dense<0.000000e+00> : vector<96x32xf32>
    %53 = tpu.matmul %37, %52, %cst_24 {dimension_numbers = #tpu.dot_dimension_numbers<[1], [0], [0], [1], [0, 0, 1, 1], [], []>} : vector<96x96xbf16>, vector<96x32xbf16>, vector<96x32xf32> -> vector<96x32xf32>
    %54 = arith.truncf %53 : vector<96x32xf32> to vector<96x32xbf16>
    %cst_25 = arith.constant dense<0.000000e+00> : vector<96x32xf32>
    %55 = tpu.matmul %54, %39, %cst_25 {dimension_numbers = #tpu.dot_dimension_numbers<[1], [0], [0], [1], [0, 0, 1, 1], [], []>} : vector<96x32xbf16>, vector<32x32xbf16>, vector<96x32xf32> -> vector<96x32xf32>
    %56 = vector.broadcast %9 : vector<1x32xf32> to vector<96x32xf32>
    %57 = arith.addf %55, %56 : vector<96x32xf32>
    %58 = arith.addf %49, %57 : vector<96x32xf32>
    %cst_26 = arith.constant 0.000000e+00 : f32
    %59 = vector.broadcast %cst_26 : f32 to vector<96x32xf32>
    %60 = arith.maximumf %58, %59 : vector<96x32xf32>
    %c1_i32_27 = arith.constant 1 : i32
    %61 = arith.truncf %60 : vector<96x32xf32> to vector<96x32xbf16>
    %cst_28 = arith.constant dense<0.000000e+00> : vector<96x32xf32>
    %62 = tpu.matmul %37, %61, %cst_28 {dimension_numbers = #tpu.dot_dimension_numbers<[1], [0], [0], [1], [0, 0, 1, 1], [], []>} : vector<96x96xbf16>, vector<96x32xbf16>, vector<96x32xf32> -> vector<96x32xf32>
    %63 = arith.truncf %62 : vector<96x32xf32> to vector<96x32xbf16>
    %cst_29 = arith.constant dense<0.000000e+00> : vector<96x32xf32>
    %64 = tpu.matmul %63, %39, %cst_29 {dimension_numbers = #tpu.dot_dimension_numbers<[1], [0], [0], [1], [0, 0, 1, 1], [], []>} : vector<96x32xbf16>, vector<32x32xbf16>, vector<96x32xf32> -> vector<96x32xf32>
    %65 = vector.broadcast %9 : vector<1x32xf32> to vector<96x32xf32>
    %66 = arith.addf %64, %65 : vector<96x32xf32>
    %67 = arith.addf %49, %66 : vector<96x32xf32>
    %cst_30 = arith.constant 0.000000e+00 : f32
    %68 = vector.broadcast %cst_30 : f32 to vector<96x32xf32>
    %69 = arith.maximumf %67, %68 : vector<96x32xf32>
    %70 = arith.truncf %69 : vector<96x32xf32> to vector<96x32xbf16>
    %cst_31 = arith.constant dense<0.000000e+00> : vector<64x32xf32>
    %71 = tpu.matmul %22, %70, %cst_31 {dimension_numbers = #tpu.dot_dimension_numbers<[1], [0], [0], [1], [0, 0, 1, 1], [], []>} : vector<64x96xbf16>, vector<96x32xbf16>, vector<64x32xf32> -> vector<64x32xf32>
    %cst_32 = arith.constant dense<0.000000e+00> : vector<64xf32>
    %72 = vector.multi_reduction <add>, %71, %cst_32 [1] : vector<64x32xf32> to vector<64xf32>
    %73 = vector.shape_cast %72 : vector<64xf32> to vector<64x1xf32>
    %cst_33 = arith.constant 0.000000e+00 : f32
    %74 = vector.broadcast %cst_33 : f32 to vector<64x1xf32>
    %75 = arith.cmpf oeq, %73, %74 : vector<64x1xf32>
    %76 = vector.shape_cast %75 : vector<64x1xi1> to vector<64x1xi1>
    %77 = vector.broadcast %76 : vector<64x1xi1> to vector<64x32xi1>
    %78 = arith.select %77, %1, %71 : vector<64x32xi1>, vector<64x32xf32>
    %c0_34 = arith.constant 0 : index
    %c0_35 = arith.constant 0 : index
    %79 = vector.load %arg8[%c0_34, %c0_35] : memref<32x32xbf16, #tpu.memory_space<vmem>>, vector<32x32xbf16>
    %cst_36 = arith.constant dense<0.000000e+00> : vector<64x32xf32>
    %80 = tpu.matmul %38, %79, %cst_36 {dimension_numbers = #tpu.dot_dimension_numbers<[1], [0], [0], [1], [0, 0, 1, 1], [], []>} : vector<64x32xbf16>, vector<32x32xbf16>, vector<64x32xf32> -> vector<64x32xf32>
    %81 = arith.truncf %78 : vector<64x32xf32> to vector<64x32xbf16>
    %c0_37 = arith.constant 0 : index
    %c0_38 = arith.constant 0 : index
    %82 = vector.load %arg9[%c0_37, %c0_38] : memref<32x32xbf16, #tpu.memory_space<vmem>>, vector<32x32xbf16>
    %cst_39 = arith.constant dense<0.000000e+00> : vector<64x32xf32>
    %83 = tpu.matmul %81, %82, %cst_39 {dimension_numbers = #tpu.dot_dimension_numbers<[1], [0], [0], [1], [0, 0, 1, 1], [], []>} : vector<64x32xbf16>, vector<32x32xbf16>, vector<64x32xf32> -> vector<64x32xf32>
    %84 = arith.addf %80, %83 : vector<64x32xf32>
    %85 = vector.broadcast %10 : vector<1x32xf32> to vector<64x32xf32>
    %86 = arith.addf %84, %85 : vector<64x32xf32>
    %cst_40 = arith.constant 0.000000e+00 : f32
    %87 = vector.broadcast %cst_40 : f32 to vector<64x32xf32>
    %88 = arith.maximumf %86, %87 : vector<64x32xf32>
    %c0_41 = arith.constant 0 : index
    %c0_42 = arith.constant 0 : index
    %c0_43 = arith.constant 0 : index
    %89 = vector.load %arg11[%c0_41, %c0_42, %c0_43] : memref<1x64x32xf32, #tpu.memory_space<vmem>>, vector<1x64x32xf32>
    %90 = vector.shape_cast %89 : vector<1x64x32xf32> to vector<64x32xf32>
    %91 = vector.shape_cast %88 : vector<64x32xf32> to vector<1x64x32xf32>
    tpu.vector_store %arg11[%c0_41, %c0_42, %c0_43], %91 {strides = array<i32>} : memref<1x64x32xf32, #tpu.memory_space<vmem>>, vector<1x64x32xf32>,
    return
  }
  func.func @transform_0(%arg0: i32) -> (i32, i32, i32) {
    %c0_i32 = arith.constant 0 : i32
    %c0_i32_0 = arith.constant 0 : i32
    %c0_i32_1 = arith.constant 0 : i32
    return %arg0, %c0_i32, %c0_i32_0 : i32, i32, i32
  }
  func.func @transform_1(%arg0: i32) -> (i32, i32, i32) {
    %c0_i32 = arith.constant 0 : i32
    %c0_i32_0 = arith.constant 0 : i32
    %c0_i32_1 = arith.constant 0 : i32
    return %arg0, %c0_i32, %c0_i32_0 : i32, i32, i32
  }
  func.func @transform_2(%arg0: i32) -> (i32, i32, i32) {
    %c0_i32 = arith.constant 0 : i32
    %c0_i32_0 = arith.constant 0 : i32
    %c0_i32_1 = arith.constant 0 : i32
    return %arg0, %c0_i32, %c0_i32_0 : i32, i32, i32
  }
  func.func @transform_3(%arg0: i32) -> (i32, i32, i32) {
    %c0_i32 = arith.constant 0 : i32
    %c0_i32_0 = arith.constant 0 : i32
    %c0_i32_1 = arith.constant 0 : i32
    return %arg0, %c0_i32, %c0_i32_0 : i32, i32, i32
  }
  func.func @transform_4(%arg0: i32) -> (i32, i32) {
    %c0_i32 = arith.constant 0 : i32
    %c0_i32_0 = arith.constant 0 : i32
    %c0_i32_1 = arith.constant 0 : i32
    return %c0_i32, %c0_i32_0 : i32, i32
  }
  func.func @transform_5(%arg0: i32) -> (i32, i32) {
    %c0_i32 = arith.constant 0 : i32
    %c0_i32_0 = arith.constant 0 : i32
    %c0_i32_1 = arith.constant 0 : i32
    return %c0_i32, %c0_i32_0 : i32, i32
  }
  func.func @transform_6(%arg0: i32) -> (i32, i32) {
    %c0_i32 = arith.constant 0 : i32
    %c0_i32_0 = arith.constant 0 : i32
    %c0_i32_1 = arith.constant 0 : i32
    return %c0_i32, %c0_i32_0 : i32, i32
  }
  func.func @transform_7(%arg0: i32) -> (i32, i32) {
    %c0_i32 = arith.constant 0 : i32
    %c0_i32_0 = arith.constant 0 : i32
    %c0_i32_1 = arith.constant 0 : i32
    return %c0_i32, %c0_i32_0 : i32, i32
  }
  func.func @transform_8(%arg0: i32) -> (i32, i32) {
    %c0_i32 = arith.constant 0 : i32
    %c0_i32_0 = arith.constant 0 : i32
    %c0_i32_1 = arith.constant 0 : i32
    return %c0_i32, %c0_i32_0 : i32, i32
  }
  func.func @transform_9(%arg0: i32) -> (i32, i32) {
    %c0_i32 = arith.constant 0 : i32
    %c0_i32_0 = arith.constant 0 : i32
    %c0_i32_1 = arith.constant 0 : i32
    return %c0_i32, %c0_i32_0 : i32, i32
  }
  func.func @transform_10(%arg0: i32) -> (i32, i32, i32) {
    %c0_i32 = arith.constant 0 : i32
    %c0_i32_0 = arith.constant 0 : i32
    %c0_i32_1 = arith.constant 0 : i32
    return %arg0, %c0_i32, %c0_i32_0 : i32, i32, i32
  }
}

</mosaic_0001>

<llo_original>
// kernel: tpu_custom_call.1
$region0: #{tpu_custom_call.1}
  #allocation0 [shape = 'u32[]', space=smem, size = 0x4, offset = 0x4, fixed_abs, tag = 'smem constant byte address 0x4 - core index']
  #allocation1 [shape = 'u32[144,128]{1,0:T(1,128)}', space=vmem, size = 0x12000, scoped, tag = 'internal scratch']
  %s0 = inlined_call_operand.vmem [shape: f32[2,64,32], index: 0, kind: input, shape index: {}]
  %s1 = inlined_call_operand.vmem [shape: f32[2,96,16], index: 1, kind: input, shape index: {}]
  %s2 = inlined_call_operand.vmem [shape: s32[2,96,1], index: 2, kind: input, shape index: {}]
  %s3 = inlined_call_operand.vmem [shape: s32[2,1,96], index: 3, kind: input, shape index: {}]
  %s4 = inlined_call_operand.vmem [shape: bf16[32,32], index: 4, kind: input, shape index: {}]
  %s5 = inlined_call_operand.vmem [shape: bf16[16,32], index: 5, kind: input, shape index: {}]
  %s6 = inlined_call_operand.vmem [shape: bf16[32,32], index: 6, kind: input, shape index: {}]
  %s7 = inlined_call_operand.vmem [shape: bf16[32,32], index: 7, kind: input, shape index: {}]
  %s8 = inlined_call_operand.vmem [shape: bf16[32,32], index: 8, kind: input, shape index: {}]
  %s9 = inlined_call_operand.vmem [shape: f32[3,32], index: 9, kind: input, shape index: {}]
  %s10 = inlined_call_operand.vmem [shape: f32[2,64,32], index: 10, kind: output, shape index: {}]
  %s11 = sld [smem:[#allocation0]]
  $region73: #{tpu_custom_call.1} parent=0
    _
  %s13 = ssub.s32 1, %s11
  %s14 = scalar_select 0, %s13, %s11
  loop: start=0, step=1, limit=4
  $region2: #{tpu_custom_call.1} parent=0 // loop_pre_header
    _
  $region3: #{tpu_custom_call.1} parent=0 // loop_header
    %s16 = sphi 0, %s20
    %p17 = scmp.ge.s32.totalorder %s16, 4
    %s26 = sphi 0, %s28
    %s29 = sphi 0, %s26
    %s30 = sphi 0, %s29
    %s46 = sphi 0, %s30
    %s52 = sphi 0, %s54
    %s55 = sphi 0, %s52
    %s56 = sphi 0, %s55
    %s72 = sphi 0, %s56
    %s78 = sphi 0, %s80
    %s81 = sphi 0, %s78
    %s82 = sphi 0, %s81
    %s98 = sphi 0, %s82
    %s104 = sphi 0, %s106
    %s107 = sphi 0, %s104
    %s108 = sphi 0, %s107
    %s124 = sphi 0, %s108
    %s128 = sphi 0, %s128
    %s130 = sphi 0, %s128
    %s131 = sphi 0, %s130
    %s145 = sphi 0, %s131
    %s149 = sphi 0, %s149
    %s151 = sphi 0, %s149
    %s152 = sphi 0, %s151
    %s166 = sphi 0, %s152
    %s170 = sphi 0, %s170
    %s172 = sphi 0, %s170
    %s173 = sphi 0, %s172
    %s187 = sphi 0, %s173
    %s191 = sphi 0, %s191
    %s193 = sphi 0, %s191
    %s194 = sphi 0, %s193
    %s208 = sphi 0, %s194
    %s212 = sphi 0, %s212
    %s214 = sphi 0, %s212
    %s215 = sphi 0, %s214
    %s229 = sphi 0, %s215
    %s233 = sphi 0, %s233
    %s235 = sphi 0, %s233
    %s236 = sphi 0, %s235
    %s250 = sphi 0, %s236
    %s256 = sphi 0, %s258
    %s259 = sphi 0, %s256
    %s260 = sphi 0, %s259
    %s276 = sphi 0, %s260
  $region4: #{tpu_custom_call.1} parent=0 // loop_header_branch
    %19 = sbr.rel (%p17) target = $region8
  $region5: #{tpu_custom_call.1} parent=0 // loop_body
    %s21 = ssub.s32 %s16, 1
    %s22 = ssub.s32 %s16, 2
    %s23 = sadd.s32 %s16, 1
    %s24 = ssub.s32 %s16, %s23
    %p25 = scmp.eq.s32.totalorder %s24, 0
    %s27 = sadd.s32 %s26, 1
    %s28 = scalar_select %p25, %s26, %s27
    %p31 = pneg %p25
    %p32 = scmp.eq.s32.totalorder %s16, 1
    %p33 = por %p31, %p32
    %p34 = scmp.ne.s32.totalorder %s26, %s29
    %p35 = scmp.eq.s32.totalorder %s16, 0
    %p36 = por %p34, %p35
    %p37 = scmp.ne.s32.totalorder %s26, %s29
    %p38 = scmp.eq.s32.totalorder %s21, 1
    %p39 = por %p37, %p38
    %p40 = scmp.ne.s32.totalorder %s29, %s30
    %p41 = scmp.eq.s32.totalorder %s21, 0
    %p42 = por %p40, %p41
    %p43 = scmp.ne.s32.totalorder %s29, %s30
    %p44 = scmp.eq.s32.totalorder %s22, 1
    %p45 = por %p43, %p44
    %p47 = scmp.ne.s32.totalorder %s30, %s46
    %p48 = scmp.eq.s32.totalorder %s22, 0
    %p49 = por %p47, %p48
    %s50 = ssub.s32 %s16, %s23
    %p51 = scmp.eq.s32.totalorder %s50, 0
    %s53 = sadd.s32 %s52, 1
    %s54 = scalar_select %p51, %s52, %s53
    %p57 = pneg %p51
    %p58 = scmp.eq.s32.totalorder %s16, 1
    %p59 = por %p57, %p58
    %p60 = scmp.ne.s32.totalorder %s52, %s55
    %p61 = scmp.eq.s32.totalorder %s16, 0
    %p62 = por %p60, %p61
    %p63 = scmp.ne.s32.totalorder %s52, %s55
    %p64 = scmp.eq.s32.totalorder %s21, 1
    %p65 = por %p63, %p64
    %p66 = scmp.ne.s32.totalorder %s55, %s56
    %p67 = scmp.eq.s32.totalorder %s21, 0
    %p68 = por %p66, %p67
    %p69 = scmp.ne.s32.totalorder %s55, %s56
    %p70 = scmp.eq.s32.totalorder %s22, 1
    %p71 = por %p69, %p70
    %p73 = scmp.ne.s32.totalorder %s56, %s72
    %p74 = scmp.eq.s32.totalorder %s22, 0
    %p75 = por %p73, %p74
    %s76 = ssub.s32 %s16, %s23
    %p77 = scmp.eq.s32.totalorder %s76, 0
    %s79 = sadd.s32 %s78, 1
    %s80 = scalar_select %p77, %s78, %s79
    %p83 = pneg %p77
    %p84 = scmp.eq.s32.totalorder %s16, 1
    %p85 = por %p83, %p84
    %p86 = scmp.ne.s32.totalorder %s78, %s81
    %p87 = scmp.eq.s32.totalorder %s16, 0
    %p88 = por %p86, %p87
    %p89 = scmp.ne.s32.totalorder %s78, %s81
    %p90 = scmp.eq.s32.totalorder %s21, 1
    %p91 = por %p89, %p90
    %p92 = scmp.ne.s32.totalorder %s81, %s82
    %p93 = scmp.eq.s32.totalorder %s21, 0
    %p94 = por %p92, %p93
    %p95 = scmp.ne.s32.totalorder %s81, %s82
    %p96 = scmp.eq.s32.totalorder %s22, 1
    %p97 = por %p95, %p96
    %p99 = scmp.ne.s32.totalorder %s82, %s98
    %p100 = scmp.eq.s32.totalorder %s22, 0
    %p101 = por %p99, %p100
    %s102 = ssub.s32 %s16, %s23
    %p103 = scmp.eq.s32.totalorder %s102, 0
    %s105 = sadd.s32 %s104, 1
    %s106 = scalar_select %p103, %s104, %s105
    %p109 = pneg %p103
    %p110 = scmp.eq.s32.totalorder %s16, 1
    %p111 = por %p109, %p110
    %p112 = scmp.ne.s32.totalorder %s104, %s107
    %p113 = scmp.eq.s32.totalorder %s16, 0
    %p114 = por %p112, %p113
    %p115 = scmp.ne.s32.totalorder %s104, %s107
    %p116 = scmp.eq.s32.totalorder %s21, 1
    %p117 = por %p115, %p116
    %p118 = scmp.ne.s32.totalorder %s107, %s108
    %p119 = scmp.eq.s32.totalorder %s21, 0
    %p120 = por %p118, %p119
    %p121 = scmp.ne.s32.totalorder %s107, %s108
    %p122 = scmp.eq.s32.totalorder %s22, 1
    %p123 = por %p121, %p122
    %p125 = scmp.ne.s32.totalorder %s108, %s124
    %p126 = scmp.eq.s32.totalorder %s22, 0
    %p127 = por %p125, %p126
    %s129 = sadd.s32 %s128, 1
    %p132 = scmp.eq.s32.totalorder %s16, 1
    %p133 = scmp.ne.s32.totalorder %s128, %s130
    %p134 = scmp.eq.s32.totalorder %s16, 0
    %p135 = por %p133, %p134
    %p136 = scmp.ne.s32.totalorder %s128, %s130
    %p137 = scmp.eq.s32.totalorder %s21, 1
    %p138 = por %p136, %p137
    %p139 = scmp.ne.s32.totalorder %s130, %s131
    %p140 = scmp.eq.s32.totalorder %s21, 0
    %p141 = por %p139, %p140
    %p142 = scmp.ne.s32.totalorder %s130, %s131
    %p143 = scmp.eq.s32.totalorder %s22, 1
    %p144 = por %p142, %p143
    %p146 = scmp.ne.s32.totalorder %s131, %s145
    %p147 = scmp.eq.s32.totalorder %s22, 0
    %p148 = por %p146, %p147
    %s150 = sadd.s32 %s149, 1
    %p153 = scmp.eq.s32.totalorder %s16, 1
    %p154 = scmp.ne.s32.totalorder %s149, %s151
    %p155 = scmp.eq.s32.totalorder %s16, 0
    %p156 = por %p154, %p155
    %p157 = scmp.ne.s32.totalorder %s149, %s151
    %p158 = scmp.eq.s32.totalorder %s21, 1
    %p159 = por %p157, %p158
    %p160 = scmp.ne.s32.totalorder %s151, %s152
    %p161 = scmp.eq.s32.totalorder %s21, 0
    %p162 = por %p160, %p161
    %p163 = scmp.ne.s32.totalorder %s151, %s152
    %p164 = scmp.eq.s32.totalorder %s22, 1
    %p165 = por %p163, %p164
    %p167 = scmp.ne.s32.totalorder %s152, %s166
    %p168 = scmp.eq.s32.totalorder %s22, 0
    %p169 = por %p167, %p168
    %s171 = sadd.s32 %s170, 1
    %p174 = scmp.eq.s32.totalorder %s16, 1
    %p175 = scmp.ne.s32.totalorder %s170, %s172
    %p176 = scmp.eq.s32.totalorder %s16, 0
    %p177 = por %p175, %p176
    %p178 = scmp.ne.s32.totalorder %s170, %s172
    %p179 = scmp.eq.s32.totalorder %s21, 1
    %p180 = por %p178, %p179
    %p181 = scmp.ne.s32.totalorder %s172, %s173
    %p182 = scmp.eq.s32.totalorder %s21, 0
    %p183 = por %p181, %p182
    %p184 = scmp.ne.s32.totalorder %s172, %s173
    %p185 = scmp.eq.s32.totalorder %s22, 1
    %p186 = por %p184, %p185
    %p188 = scmp.ne.s32.totalorder %s173, %s187
    %p189 = scmp.eq.s32.totalorder %s22, 0
    %p190 = por %p188, %p189
    %s192 = sadd.s32 %s191, 1
    %p195 = scmp.eq.s32.totalorder %s16, 1
    %p196 = scmp.ne.s32.totalorder %s191, %s193
    %p197 = scmp.eq.s32.totalorder %s16, 0
    %p198 = por %p196, %p197
    %p199 = scmp.ne.s32.totalorder %s191, %s193
    %p200 = scmp.eq.s32.totalorder %s21, 1
    %p201 = por %p199, %p200
    %p202 = scmp.ne.s32.totalorder %s193, %s194
    %p203 = scmp.eq.s32.totalorder %s21, 0
    %p204 = por %p202, %p203
    %p205 = scmp.ne.s32.totalorder %s193, %s194
    %p206 = scmp.eq.s32.totalorder %s22, 1
    %p207 = por %p205, %p206
    %p209 = scmp.ne.s32.totalorder %s194, %s208
    %p210 = scmp.eq.s32.totalorder %s22, 0
    %p211 = por %p209, %p210
    %s213 = sadd.s32 %s212, 1
    %p216 = scmp.eq.s32.totalorder %s16, 1
    %p217 = scmp.ne.s32.totalorder %s212, %s214
    %p218 = scmp.eq.s32.totalorder %s16, 0
    %p219 = por %p217, %p218
    %p220 = scmp.ne.s32.totalorder %s212, %s214
    %p221 = scmp.eq.s32.totalorder %s21, 1
    %p222 = por %p220, %p221
    %p223 = scmp.ne.s32.totalorder %s214, %s215
    %p224 = scmp.eq.s32.totalorder %s21, 0
    %p225 = por %p223, %p224
    %p226 = scmp.ne.s32.totalorder %s214, %s215
    %p227 = scmp.eq.s32.totalorder %s22, 1
    %p228 = por %p226, %p227
    %p230 = scmp.ne.s32.totalorder %s215, %s229
    %p231 = scmp.eq.s32.totalorder %s22, 0
    %p232 = por %p230, %p231
    %s234 = sadd.s32 %s233, 1
    %p237 = scmp.eq.s32.totalorder %s16, 1
    %p238 = scmp.ne.s32.totalorder %s233, %s235
    %p239 = scmp.eq.s32.totalorder %s16, 0
    %p240 = por %p238, %p239
    %p241 = scmp.ne.s32.totalorder %s233, %s235
    %p242 = scmp.eq.s32.totalorder %s21, 1
    %p243 = por %p241, %p242
    %p244 = scmp.ne.s32.totalorder %s235, %s236
    %p245 = scmp.eq.s32.totalorder %s21, 0
    %p246 = por %p244, %p245
    %p247 = scmp.ne.s32.totalorder %s235, %s236
    %p248 = scmp.eq.s32.totalorder %s22, 1
    %p249 = por %p247, %p248
    %p251 = scmp.ne.s32.totalorder %s236, %s250
    %p252 = scmp.eq.s32.totalorder %s22, 0
    %p253 = por %p251, %p252
    %s254 = ssub.s32 %s16, %s23
    %p255 = scmp.eq.s32.totalorder %s254, 0
    %s257 = sadd.s32 %s256, 1
    %s258 = scalar_select %p255, %s256, %s257
    %p261 = pneg %p255
    %p262 = scmp.eq.s32.totalorder %s16, 1
    %p263 = por %p261, %p262
    %p264 = scmp.ne.s32.totalorder %s256, %s259
    %p265 = scmp.eq.s32.totalorder %s16, 0
    %p266 = por %p264, %p265
    %p267 = scmp.ne.s32.totalorder %s256, %s259
    %p268 = scmp.eq.s32.totalorder %s21, 1
    %p269 = por %p267, %p268
    %p270 = scmp.ne.s32.totalorder %s259, %s260
    %p271 = scmp.eq.s32.totalorder %s21, 0
    %p272 = por %p270, %p271
    %p273 = scmp.ne.s32.totalorder %s259, %s260
    %p274 = scmp.eq.s32.totalorder %s22, 1
    %p275 = por %p273, %p274
    %p277 = scmp.ne.s32.totalorder %s260, %s276
    %p278 = scmp.eq.s32.totalorder %s22, 0
    %p279 = por %p277, %p278
    %p280 = scmp.le.s32.totalorder 1, %s16
    %p281 = scmp.lt.s32.totalorder %s16, 3
    %p282 = pnand %p280, %p281
    %p283 = pneg %p282
    // Predicated region
    $region9: #{tpu_custom_call.1} parent=5 // pred_check
      _
    $region10: #{tpu_custom_call.1} parent=5 // pred_check_branch
      %285 = sbr.rel (%p282) target = $region12
    $region11: #{tpu_custom_call.1} parent=5 // pred_region
      %s286 = ssub.s32 %s16, 1
      // Predicated region
      $region13: #{tpu_custom_call.1} parent=11 // pred_check
        %p287 = pneg %p141
      $region14: #{tpu_custom_call.1} parent=11 // pred_check_branch
        %289 = sbr.rel (%p287) target = $region16
      $region15: #{tpu_custom_call.1} parent=11 // pred_region
        _
      $region16: #{tpu_custom_call.1} parent=11 // pred_fallthru
        _
      // Predicated region
      $region17: #{tpu_custom_call.1} parent=11 // pred_check
        %p290 = pneg %p162
      $region18: #{tpu_custom_call.1} parent=11 // pred_check_branch
        %292 = sbr.rel (%p290) target = $region20
      $region19: #{tpu_custom_call.1} parent=11 // pred_region
        _
      $region20: #{tpu_custom_call.1} parent=11 // pred_fallthru
        _
      // Predicated region
      $region21: #{tpu_custom_call.1} parent=11 // pred_check
        %p293 = pneg %p183
      $region22: #{tpu_custom_call.1} parent=11 // pred_check_branch
        %295 = sbr.rel (%p293) target = $region24
      $region23: #{tpu_custom_call.1} parent=11 // pred_region
        _
      $region24: #{tpu_custom_call.1} parent=11 // pred_fallthru
        _
      // Predicated region
      $region25: #{tpu_custom_call.1} parent=11 // pred_check
        %p296 = pneg %p204
      $region26: #{tpu_custom_call.1} parent=11 // pred_check_branch
        %298 = sbr.rel (%p296) target = $region28
      $region27: #{tpu_custom_call.1} parent=11 // pred_region
        _
      $region28: #{tpu_custom_call.1} parent=11 // pred_fallthru
        _
      // Predicated region
      $region29: #{tpu_custom_call.1} parent=11 // pred_check
        %p299 = pneg %p225
      $region30: #{tpu_custom_call.1} parent=11 // pred_check_branch
        %301 = sbr.rel (%p299) target = $region32
      $region31: #{tpu_custom_call.1} parent=11 // pred_region
        _
      $region32: #{tpu_custom_call.1} parent=11 // pred_fallthru
        _
      // Predicated region
      $region33: #{tpu_custom_call.1} parent=11 // pred_check
        %p302 = pneg %p246
      $region34: #{tpu_custom_call.1} parent=11 // pred_check_branch
        %304 = sbr.rel (%p302) target = $region36
      $region35: #{tpu_custom_call.1} parent=11 // pred_region
        _
      $region36: #{tpu_custom_call.1} parent=11 // pred_fallthru
        _
    $region12: #{tpu_custom_call.1} parent=5 // pred_fallthru
      _
    %p305 = scmp.lt.s32.totalorder %s16, 2
    // Predicated region
    $region37: #{tpu_custom_call.1} parent=5 // pred_check
      %p306 = pneg %p305
    $region38: #{tpu_custom_call.1} parent=5 // pred_check_branch
      %308 = sbr.rel (%p306) target = $region40
    $region39: #{tpu_custom_call.1} parent=5 // pred_region
      // Predicated region
      $region41: #{tpu_custom_call.1} parent=39 // pred_check
        %p309 = pneg %p36
      $region42: #{tpu_custom_call.1} parent=39 // pred_check_branch
        %311 = sbr.rel (%p309) target = $region44
      $region43: #{tpu_custom_call.1} parent=39 // pred_region
        %p312 = scmp.lt.s32.totalorder %s16, 1
        %s313 = scalar_select %p312, %s16, 1
        %s314 = smul.addr %s313, 8
        %s315 = smul.addr %s314, 8
        %s316 = scalar_lea.vmem %s0, %s315
      $region44: #{tpu_custom_call.1} parent=39 // pred_fallthru
        _
      // Predicated region
      $region45: #{tpu_custom_call.1} parent=39 // pred_check
        %p317 = pneg %p62
      $region46: #{tpu_custom_call.1} parent=39 // pred_check_branch
        %319 = sbr.rel (%p317) target = $region48
      $region47: #{tpu_custom_call.1} parent=39 // pred_region
        %p320 = scmp.lt.s32.totalorder %s16, 1
        %s321 = scalar_select %p320, %s16, 1
        %s322 = smul.addr %s321, 12
        %s323 = smul.addr %s322, 8
        %s324 = scalar_lea.vmem %s1, %s323
      $region48: #{tpu_custom_call.1} parent=39 // pred_fallthru
        _
      // Predicated region
      $region49: #{tpu_custom_call.1} parent=39 // pred_check
        %p325 = pneg %p88
      $region50: #{tpu_custom_call.1} parent=39 // pred_check_branch
        %327 = sbr.rel (%p325) target = $region52
      $region51: #{tpu_custom_call.1} parent=39 // pred_region
        %p328 = scmp.lt.s32.totalorder %s16, 1
        %s329 = scalar_select %p328, %s16, 1
        %s330 = smul.addr %s329, 12
        %s331 = smul.addr %s330, 8
        %s332 = scalar_lea.vmem %s2, %s331
      $region52: #{tpu_custom_call.1} parent=39 // pred_fallthru
        _
      // Predicated region
      $region53: #{tpu_custom_call.1} parent=39 // pred_check
        %p333 = pneg %p114
      $region54: #{tpu_custom_call.1} parent=39 // pred_check_branch
        %335 = sbr.rel (%p333) target = $region56
      $region55: #{tpu_custom_call.1} parent=39 // pred_region
        %p336 = scmp.lt.s32.totalorder %s16, 1
        %s337 = scalar_select %p336, %s16, 1
        %s338 = scalar_lea.vmem %s3, %s337
      $region56: #{tpu_custom_call.1} parent=39 // pred_fallthru
        _
    $region40: #{tpu_custom_call.1} parent=5 // pred_fallthru
      _
    %p339 = scmp.le.s32.totalorder 1, %s16
    %p340 = scmp.lt.s32.totalorder %s16, 3
    %p341 = pnand %p339, %p340
    %p342 = pneg %p341
    // Predicated region
    $region57: #{tpu_custom_call.1} parent=5 // pred_check
      _
    $region58: #{tpu_custom_call.1} parent=5 // pred_check_branch
      %344 = sbr.rel (%p341) target = $region60
    $region59: #{tpu_custom_call.1} parent=5 // pred_region
      %s345 = ssub.s32 %s16, 1
      %p346 = scmp.lt.s32.totalorder %s21, 1
      %s347 = scalar_select %p346, %s21, 1
      %s348 = smul.addr %s347, 8
      %s349 = smul.addr %s348, 8
      %s350 = scalar_lea.vmem %s0, %s349
      %p351 = pneg %p42
      %p352 = pneg %p39
      %p353 = scmp.lt.s32.totalorder %s21, 1
      %s354 = scalar_select %p353, %s21, 1
      %s355 = smul.addr %s354, 12
      %s356 = smul.addr %s355, 8
      %s357 = scalar_lea.vmem %s1, %s356
      %p358 = pneg %p68
      %p359 = pneg %p65
      %p360 = scmp.lt.s32.totalorder %s21, 1
      %s361 = scalar_select %p360, %s21, 1
      %s362 = smul.addr %s361, 12
      %s363 = smul.addr %s362, 8
      %s364 = scalar_lea.vmem %s2, %s363
      %p365 = pneg %p94
      %p366 = pneg %p91
      %p367 = scmp.lt.s32.totalorder %s21, 1
      %s368 = scalar_select %p367, %s21, 1
      %s369 = scalar_lea.vmem %s3, %s368
      %p370 = pneg %p120
      %p371 = pneg %p117
      %p372 = pneg %p141
      %p373 = pneg %p138
      %p374 = pneg %p162
      %p375 = pneg %p159
      %p376 = pneg %p183
      %p377 = pneg %p180
      %p378 = pneg %p204
      %p379 = pneg %p201
      %p380 = pneg %p225
      %p381 = pneg %p222
      %p382 = pneg %p246
      %p383 = pneg %p243
      %p384 = pneg %p272
      %p385 = pneg %p269
      %p386 = scmp.lt.s32.totalorder %s21, 1
      %s387 = scalar_select %p386, %s21, 1
      %s388 = smul.addr %s387, 8
      %s389 = smul.addr %s388, 8
      %s390 = scalar_lea.vmem %s10, %s389
      %p391 = scmp.lt.s32.totalorder %s21, 1
      %s392 = scalar_select %p391, %s21, 1
      %s393 = smul.addr %s392, 8
      %s394 = smul.addr %s393, 8
      %s395 = scalar_lea.vmem %s0, %s394
      %p396 = scmp.lt.s32.totalorder %s21, 1
      %s397 = scalar_select %p396, %s21, 1
      %s398 = smul.addr %s397, 12
      %s399 = smul.addr %s398, 8
      %s400 = scalar_lea.vmem %s1, %s399
      %p401 = scmp.lt.s32.totalorder %s21, 1
      %s402 = scalar_select %p401, %s21, 1
      %s403 = smul.addr %s402, 12
      %s404 = smul.addr %s403, 8
      %s405 = scalar_lea.vmem %s2, %s404
      %p406 = scmp.lt.s32.totalorder %s21, 1
      %s407 = scalar_select %p406, %s21, 1
      %s408 = scalar_lea.vmem %s3, %s407
      %p409 = scmp.lt.s32.totalorder %s21, 1
      %s410 = scalar_select %p409, %s21, 1
      %s411 = smul.addr %s410, 8
      %s412 = smul.addr %s411, 8
      %s413 = scalar_lea.vmem %s10, %s412
      %v415 = vld [vmem:[%s395] sm:$0xff]
      %v416 = vld [vmem:[%s395 + $0x8] sm:$0xff]
      %v417 = vld [vmem:[%s395 + $0x10] sm:$0xff]
      %v418 = vld [vmem:[%s395 + $0x18] sm:$0xff]
      %v419 = vld [vmem:[%s395 + $0x20] sm:$0xff]
      %v420 = vld [vmem:[%s395 + $0x28] sm:$0xff]
      %v421 = vld [vmem:[%s395 + $0x30] sm:$0xff]
      %v422 = vld [vmem:[%s395 + $0x38] sm:$0xff]
      %v423 = vld [vmem:[%s400] sm:$0xff]
      %v424 = vld [vmem:[%s400 + $0x8] sm:$0xff]
      %v425 = vld [vmem:[%s400 + $0x10] sm:$0xff]
      %v426 = vld [vmem:[%s400 + $0x18] sm:$0xff]
      %v427 = vld [vmem:[%s400 + $0x20] sm:$0xff]
      %v428 = vld [vmem:[%s400 + $0x28] sm:$0xff]
      %v429 = vld [vmem:[%s400 + $0x30] sm:$0xff]
      %v430 = vld [vmem:[%s400 + $0x38] sm:$0xff]
      %v431 = vld [vmem:[%s400 + $0x40] sm:$0xff]
      %v432 = vld [vmem:[%s400 + $0x48] sm:$0xff]
      %v433 = vld [vmem:[%s400 + $0x50] sm:$0xff]
      %v434 = vld [vmem:[%s400 + $0x58] sm:$0xff]
      %v435 = vld [vmem:[%s405] sm:$0xff]
      %v436 = vld [vmem:[%s405 + $0x8] sm:$0xff]
      %v437 = vld [vmem:[%s405 + $0x10] sm:$0xff]
      %v438 = vld [vmem:[%s405 + $0x18] sm:$0xff]
      %v439 = vld [vmem:[%s405 + $0x20] sm:$0xff]
      %v440 = vld [vmem:[%s405 + $0x28] sm:$0xff]
      %v441 = vld [vmem:[%s405 + $0x30] sm:$0xff]
      %v442 = vld [vmem:[%s405 + $0x38] sm:$0xff]
      %v443 = vld [vmem:[%s405 + $0x40] sm:$0xff]
      %v444 = vld [vmem:[%s405 + $0x48] sm:$0xff]
      %v445 = vld [vmem:[%s405 + $0x50] sm:$0xff]
      %v446 = vld [vmem:[%s405 + $0x58] sm:$0xff]
      %v447 = vld [vmem:[%s408] sm:$0x1]
      %v448 = vld [vmem:[%s9] sm:$0x1]
      %v449 = vld [vmem:[%s9 + $0x1] sm:$0x1]
      %v450 = vld [vmem:[%s9 + $0x2] sm:$0x1]
      %v451 = vlaneseq
      %v452 = vand.u32 %v451, 127
      %453 = vset.pattern.permute.xlu0 0
      %454 = vperm.xlu0 %453, %v435
      %v455 = vpop.permute.xlu0 %454
      %456 = vset.pattern.permute.xlu0 0
      %457 = vperm.xlu0 %456, %v436
      %v458 = vpop.permute.xlu0 %457
      %459 = vset.pattern.permute.xlu0 0
      %460 = vperm.xlu0 %459, %v437
      %v461 = vpop.permute.xlu0 %460
      %462 = vset.pattern.permute.xlu0 0
      %463 = vperm.xlu0 %462, %v438
      %v464 = vpop.permute.xlu0 %463
      %465 = vset.pattern.permute.xlu0 0
      %466 = vperm.xlu0 %465, %v439
      %v467 = vpop.permute.xlu0 %466
      %468 = vset.pattern.permute.xlu0 0
      %469 = vperm.xlu0 %468, %v440
      %v470 = vpop.permute.xlu0 %469
      %471 = vset.pattern.permute.xlu0 0
      %472 = vperm.xlu0 %471, %v441
      %v473 = vpop.permute.xlu0 %472
      %474 = vset.pattern.permute.xlu0 0
      %475 = vperm.xlu0 %474, %v442
      %v476 = vpop.permute.xlu0 %475
      %477 = vset.pattern.permute.xlu0 0
      %478 = vperm.xlu0 %477, %v443
      %v479 = vpop.permute.xlu0 %478
      %480 = vset.pattern.permute.xlu0 0
      %481 = vperm.xlu0 %480, %v444
      %v482 = vpop.permute.xlu0 %481
      %483 = vset.pattern.permute.xlu0 0
      %484 = vperm.xlu0 %483, %v445
      %v485 = vpop.permute.xlu0 %484
      %486 = vset.pattern.permute.xlu0 0
      %487 = vperm.xlu0 %486, %v446
      %v488 = vpop.permute.xlu0 %487
      %vm489 = vcmp.eq.s32.totalorder %v452, %v455
      %vm490 = vcmp.eq.s32.totalorder %v452, %v458
      %vm491 = vcmp.eq.s32.totalorder %v452, %v461
      %vm492 = vcmp.eq.s32.totalorder %v452, %v464
      %vm493 = vcmp.eq.s32.totalorder %v452, %v467
      %vm494 = vcmp.eq.s32.totalorder %v452, %v470
      %vm495 = vcmp.eq.s32.totalorder %v452, %v473
      %vm496 = vcmp.eq.s32.totalorder %v452, %v476
      %vm497 = vcmp.eq.s32.totalorder %v452, %v479
      %vm498 = vcmp.eq.s32.totalorder %v452, %v482
      %vm499 = vcmp.eq.s32.totalorder %v452, %v485
      %vm500 = vcmp.eq.s32.totalorder %v452, %v488
      %v501 = vsel %vm489, 1, 0
      %v502 = vsel %vm490, 1, 0
      %v503 = vsel %vm491, 1, 0
      %v504 = vsel %vm492, 1, 0
      %v505 = vsel %vm493, 1, 0
      %v506 = vsel %vm494, 1, 0
      %v507 = vsel %vm495, 1, 0
      %v508 = vsel %vm496, 1, 0
      %v509 = vsel %vm497, 1, 0
      %v510 = vsel %vm498, 1, 0
      %v511 = vsel %vm499, 1, 0
      %v512 = vsel %vm500, 1, 0
      %v513 = vcvt.s32.f32 %v501
      %v514 = vcvt.s32.f32 %v502
      %v515 = vcvt.s32.f32 %v503
      %v516 = vcvt.s32.f32 %v504
      %v517 = vcvt.s32.f32 %v505
      %v518 = vcvt.s32.f32 %v506
      %v519 = vcvt.s32.f32 %v507
      %v520 = vcvt.s32.f32 %v508
      %v521 = vcvt.s32.f32 %v509
      %v522 = vcvt.s32.f32 %v510
      %v523 = vcvt.s32.f32 %v511
      %v524 = vcvt.s32.f32 %v512
      %v525 = vpack.c.bf16 %v514, %v513
      %v526 = vpack.c.bf16 %v516, %v515
      %v527 = vpack.c.bf16 %v518, %v517
      %v528 = vpack.c.bf16 %v520, %v519
      %v529 = vpack.c.bf16 %v522, %v521
      %v530 = vpack.c.bf16 %v524, %v523
      %v531 = vlaneseq
      %v532 = vshrl.u32 %v531, 7
      %v533 = vadd.s32 %v532, 8
      %v534 = vadd.s32 %v532, 16
      %v535 = vadd.s32 %v532, 24
      %v536 = vadd.s32 %v532, 32
      %v537 = vadd.s32 %v532, 40
      %v538 = vadd.s32 %v532, 48
      %v539 = vadd.s32 %v532, 56
      %v540 = vlaneseq
      %v541 = vshrl.u32 %v540, 7
      %v542 = vsub.s32 0, %v541
      %v543 = vrot.slane %v447, %v542
      %vm544 = vcmp.eq.s32.totalorder %v532, %v543
      %vm545 = vcmp.eq.s32.totalorder %v533, %v543
      %vm546 = vcmp.eq.s32.totalorder %v534, %v543
      %vm547 = vcmp.eq.s32.totalorder %v535, %v543
      %vm548 = vcmp.eq.s32.totalorder %v536, %v543
      %vm549 = vcmp.eq.s32.totalorder %v537, %v543
      %vm550 = vcmp.eq.s32.totalorder %v538, %v543
      %vm551 = vcmp.eq.s32.totalorder %v539, %v543
      %v552 = vsel %vm544, 1, 0
      %v553 = vsel %vm545, 1, 0
      %v554 = vsel %vm546, 1, 0
      %v555 = vsel %vm547, 1, 0
      %v556 = vsel %vm548, 1, 0
      %v557 = vsel %vm549, 1, 0
      %v558 = vsel %vm550, 1, 0
      %v559 = vsel %vm551, 1, 0
      %v560 = vcvt.s32.f32 %v552
      %v561 = vcvt.s32.f32 %v553
      %v562 = vcvt.s32.f32 %v554
      %v563 = vcvt.s32.f32 %v555
      %v564 = vcvt.s32.f32 %v556
      %v565 = vcvt.s32.f32 %v557
      %v566 = vcvt.s32.f32 %v558
      %v567 = vcvt.s32.f32 %v559
      %v568 = vpack.c.bf16 %v561, %v560
      %v569 = vpack.c.bf16 %v563, %v562
      %v570 = vpack.c.bf16 %v565, %v564
      %v571 = vpack.c.bf16 %v567, %v566
      %v572 = vadd.s32 %v532, 64
      %v573 = vadd.s32 %v532, 72
      %v574 = vadd.s32 %v532, 80
      %v575 = vadd.s32 %v532, 88
      %vm576 = vcmp.eq.s32.totalorder %v543, %v455
      %vm577 = vcmp.eq.s32.totalorder %v543, %v458
      %vm578 = vcmp.eq.s32.totalorder %v543, %v461
      %vm579 = vcmp.eq.s32.totalorder %v543, %v464
      %vm580 = vcmp.eq.s32.totalorder %v543, %v467
      %vm581 = vcmp.eq.s32.totalorder %v543, %v470
      %vm582 = vcmp.eq.s32.totalorder %v543, %v473
      %vm583 = vcmp.eq.s32.totalorder %v543, %v476
      %vm584 = vcmp.eq.s32.totalorder %v543, %v479
      %vm585 = vcmp.eq.s32.totalorder %v543, %v482
      %vm586 = vcmp.eq.s32.totalorder %v543, %v485
      %vm587 = vcmp.eq.s32.totalorder %v543, %v488
      %v588 = vsel %vm576, 1, 0
      %v589 = vsel %vm577, 1, 0
      %v590 = vsel %vm578, 1, 0
      %v591 = vsel %vm579, 1, 0
      %v592 = vsel %vm580, 1, 0
      %v593 = vsel %vm581, 1, 0
      %v594 = vsel %vm582, 1, 0
      %v595 = vsel %vm583, 1, 0
      %v596 = vsel %vm584, 1, 0
      %v597 = vsel %vm585, 1, 0
      %v598 = vsel %vm586, 1, 0
      %v599 = vsel %vm587, 1, 0
      %v600 = vcvt.s32.f32 %v588
      %v601 = vcvt.s32.f32 %v589
      %v602 = vcvt.s32.f32 %v590
      %v603 = vcvt.s32.f32 %v591
      %v604 = vcvt.s32.f32 %v592
      %v605 = vcvt.s32.f32 %v593
      %v606 = vcvt.s32.f32 %v594
      %v607 = vcvt.s32.f32 %v595
      %v608 = vcvt.s32.f32 %v596
      %v609 = vcvt.s32.f32 %v597
      %v610 = vcvt.s32.f32 %v598
      %v611 = vcvt.s32.f32 %v599
      %v612 = vxor.u32 %v532, 1
      %v613 = vxor.u32 %v533, 1
      %v614 = vxor.u32 %v534, 1
      %v615 = vxor.u32 %v535, 1
      %v616 = vxor.u32 %v536, 1
      %v617 = vxor.u32 %v537, 1
      %v618 = vxor.u32 %v538, 1
      %v619 = vxor.u32 %v539, 1
      %v620 = vxor.u32 %v572, 1
      %v621 = vxor.u32 %v573, 1
      %v622 = vxor.u32 %v574, 1
      %v623 = vxor.u32 %v575, 1
      %vm624 = vcmp.eq.s32.totalorder %v452, %v612
      %vm625 = vcmp.eq.s32.totalorder %v452, %v613
      %vm626 = vcmp.eq.s32.totalorder %v452, %v614
      %vm627 = vcmp.eq.s32.totalorder %v452, %v615
      %vm628 = vcmp.eq.s32.totalorder %v452, %v616
      %vm629 = vcmp.eq.s32.totalorder %v452, %v617
      %vm630 = vcmp.eq.s32.totalorder %v452, %v618
      %vm631 = vcmp.eq.s32.totalorder %v452, %v619
      %vm632 = vcmp.eq.s32.totalorder %v452, %v620
      %vm633 = vcmp.eq.s32.totalorder %v452, %v621
      %vm634 = vcmp.eq.s32.totalorder %v452, %v622
      %vm635 = vcmp.eq.s32.totalorder %v452, %v623
      %v636 = vsel %vm624, 1, 0
      %v637 = vsel %vm625, 1, 0
      %v638 = vsel %vm626, 1, 0
      %v639 = vsel %vm627, 1, 0
      %v640 = vsel %vm628, 1, 0
      %v641 = vsel %vm629, 1, 0
      %v642 = vsel %vm630, 1, 0
      %v643 = vsel %vm631, 1, 0
      %v644 = vsel %vm632, 1, 0
      %v645 = vsel %vm633, 1, 0
      %v646 = vsel %vm634, 1, 0
      %v647 = vsel %vm635, 1, 0
      %v648 = vcvt.s32.f32 %v636
      %v649 = vcvt.s32.f32 %v637
      %v650 = vcvt.s32.f32 %v638
      %v651 = vcvt.s32.f32 %v639
      %v652 = vcvt.s32.f32 %v640
      %v653 = vcvt.s32.f32 %v641
      %v654 = vcvt.s32.f32 %v642
      %v655 = vcvt.s32.f32 %v643
      %v656 = vcvt.s32.f32 %v644
      %v657 = vcvt.s32.f32 %v645
      %v658 = vcvt.s32.f32 %v646
      %v659 = vcvt.s32.f32 %v647
      %v660 = vsub.f32 %v600, %v648
      %v661 = vsub.f32 %v601, %v649
      %v662 = vsub.f32 %v602, %v650
      %v663 = vsub.f32 %v603, %v651
      %v664 = vsub.f32 %v604, %v652
      %v665 = vsub.f32 %v605, %v653
      %v666 = vsub.f32 %v606, %v654
      %v667 = vsub.f32 %v607, %v655
      %v668 = vsub.f32 %v608, %v656
      %v669 = vsub.f32 %v609, %v657
      %v670 = vsub.f32 %v610, %v658
      %v671 = vsub.f32 %v611, %v659
      %v672 = vpack.c.bf16 %v661, %v660
      %v673 = vpack.c.bf16 %v663, %v662
      %v674 = vpack.c.bf16 %v665, %v664
      %v675 = vpack.c.bf16 %v667, %v666
      %v676 = vpack.c.bf16 %v669, %v668
      %v677 = vpack.c.bf16 %v671, %v670
      %v678 = vpack.c.bf16 %v416, %v415
      %v679 = vpack.c.bf16 %v418, %v417
      %v680 = vpack.c.bf16 %v420, %v419
      %v681 = vpack.c.bf16 %v422, %v421
      %v682 = vld [vmem:[%s6] sm:$0xf]
      %v683 = vld [vmem:[%s6 + $0x4] sm:$0xf]
      %v684 = vld [vmem:[%s6 + $0x8] sm:$0xf]
      %v685 = vld [vmem:[%s6 + $0xc] sm:$0xf]
      %v686 = vld [vmem:[%s4] sm:$0xf]
      %v687 = vld [vmem:[%s4 + $0x4] sm:$0xf]
      %v688 = vld [vmem:[%s4 + $0x8] sm:$0xf]
      %v689 = vld [vmem:[%s4 + $0xc] sm:$0xf]
      %v694 = vunpack.c.l.b16 %v686
      %v695 = vunpack.c.l.b16 %v687
      %v696 = vunpack.c.l.b16 %v688
      %v697 = vunpack.c.l.b16 %v689
      %v698 = vpack.c.b16 %v695, %v694
      %v699 = vpack.c.b16 %v697, %v696
      %vm702 = vcmask 261120
      %v704 = vsel %vm702, %v678, 0
      %v707 = vsel %vm702, %v679, 0
      %v710 = vsel %vm702, %v680, 0
      %v713 = vsel %vm702, %v681, 0
      %715 = vmatprep.subr.bf16.mxu0 0
      %716 = vmatpush1.bf16.msra.mxu0 %v698
      %717 = vmatprep.subr.bf16.mxu0 0
      %718 = vmatpush1.bf16.msra.mxu0 %v699
      %719 = vmatprep.subr.bf16.mxu0 0
      %720 = vmatpush1.bf16.msra.mxu0 0
      %721 = vmatprep.subr.bf16.mxu0 0
      %722 = vmatpush1.bf16.msra.mxu0 0
      %723 = vmatprep.subr.bf16.mxu0 0
      %724 = vmatpush1.bf16.msra.mxu0 0
      %725 = vmatprep.subr.bf16.mxu0 0
      %726 = vmatpush1.bf16.msra.mxu0 0
      %727 = vmatprep.subr.bf16.mxu0 0
      %728 = vmatpush1.bf16.msra.mxu0 0
      %729 = vmatprep.subr.bf16.mxu0 0
      %730 = vmatpush1.bf16.msra.mxu0 0
      %731 = vmatprep.subr.bf16.mxu0 0
      %732 = vmatpush1.bf16.msra.mxu0 0
      %733 = vmatprep.subr.bf16.mxu0 0
      %734 = vmatpush1.bf16.msra.mxu0 0
      %735 = vmatprep.subr.bf16.mxu0 0
      %736 = vmatpush1.bf16.msra.mxu0 0
      %737 = vmatprep.subr.bf16.mxu0 0
      %738 = vmatpush1.bf16.msra.mxu0 0
      %739 = vmatprep.subr.bf16.mxu0 0
      %740 = vmatpush1.bf16.msra.mxu0 0
      %741 = vmatprep.subr.bf16.mxu0 0
      %742 = vmatpush1.bf16.msra.mxu0 0
      %743 = vmatprep.subr.bf16.mxu0 0
      %744 = vmatpush1.bf16.msra.mxu0 0
      %745 = vmatprep.subr.bf16.mxu0 0
      %746 = vmatpush1.bf16.msra.mxu0 0
      %747 = vmatprep.mubr.bf16.mxu0 0
      %748 = vmatmul.mubr.bf16.gmra.mrb[0].mxu0 %v704
      %v749 = vpop.f32.mrb[0].mxu0
      %v750 = vadd.f32 0.0, %v749
      %v751 = vpop.f32.mrb[0].mxu0
      %v752 = vpop.f32.mrb[0].mxu0
      %v753 = vadd.f32 0.0, %v752
      %v754 = vpop.f32.mrb[0].mxu0
      %755 = vmatprep.mubr.bf16.mxu0 0
      %756 = vmatmul.mubr.bf16.gmra.mrb[0].mxu0 %v707
      %v757 = vpop.f32.mrb[0].mxu0
      %v758 = vadd.f32 0.0, %v757
      %v759 = vpop.f32.mrb[0].mxu0
      %v760 = vpop.f32.mrb[0].mxu0
      %v761 = vadd.f32 0.0, %v760
      %v762 = vpop.f32.mrb[0].mxu0
      %763 = vmatprep.mubr.bf16.mxu0 0
      %764 = vmatmul.mubr.bf16.gmra.mrb[0].mxu0 %v710
      %v765 = vpop.f32.mrb[0].mxu0
      %v766 = vadd.f32 0.0, %v765
      %v767 = vpop.f32.mrb[0].mxu0
      %v768 = vpop.f32.mrb[0].mxu0
      %v769 = vadd.f32 0.0, %v768
      %v770 = vpop.f32.mrb[0].mxu0
      %771 = vmatprep.mubr.bf16.mxu0 0
      %772 = vmatmul.mubr.bf16.gmra.mrb[0].mxu0 %v713
      %v773 = vpop.f32.mrb[0].mxu0
      %v774 = vadd.f32 0.0, %v773
      %v775 = vpop.f32.mrb[0].mxu0
      %v776 = vpop.f32.mrb[0].mxu0
      %v777 = vadd.f32 0.0, %v776
      %v778 = vpop.f32.mrb[0].mxu0
      %779 = vdwg.mxu0
      %v780 = vpack.c.bf16 %v424, %v423
      %v781 = vpack.c.bf16 %v426, %v425
      %v782 = vpack.c.bf16 %v428, %v427
      %v783 = vpack.c.bf16 %v430, %v429
      %v784 = vpack.c.bf16 %v432, %v431
      %v785 = vpack.c.bf16 %v434, %v433
      %v786 = vld [vmem:[%s5] sm:$0xf]
      %v787 = vld [vmem:[%s5 + $0x4] sm:$0xf]
      %v790 = vunpack.c.l.b16 %v786
      %v791 = vunpack.c.l.b16 %v787
      %v792 = vpack.c.b16 %v791, %v790
      %vm794 = vcmask 130048
      %v796 = vsel %vm794, %v780, 0
      %v799 = vsel %vm794, %v781, 0
      %v802 = vsel %vm794, %v782, 0
      %v805 = vsel %vm794, %v783, 0
      %v808 = vsel %vm794, %v784, 0
      %v811 = vsel %vm794, %v785, 0
      %813 = vmatprep.subr.bf16.mxu0 0
      %814 = vmatpush1.bf16.msra.mxu0 %v792
      %815 = vmatprep.subr.bf16.mxu0 0
      %816 = vmatpush1.bf16.msra.mxu0 0
      %817 = vmatprep.subr.bf16.mxu0 0
      %818 = vmatpush1.bf16.msra.mxu0 0
      %819 = vmatprep.subr.bf16.mxu0 0
      %820 = vmatpush1.bf16.msra.mxu0 0
      %821 = vmatprep.subr.bf16.mxu0 0
      %822 = vmatpush1.bf16.msra.mxu0 0
      %823 = vmatprep.subr.bf16.mxu0 0
      %824 = vmatpush1.bf16.msra.mxu0 0
      %825 = vmatprep.subr.bf16.mxu0 0
      %826 = vmatpush1.bf16.msra.mxu0 0
      %827 = vmatprep.subr.bf16.mxu0 0
      %828 = vmatpush1.bf16.msra.mxu0 0
      %829 = vmatprep.subr.bf16.mxu0 0
      %830 = vmatpush1.bf16.msra.mxu0 0
      %831 = vmatprep.subr.bf16.mxu0 0
      %832 = vmatpush1.bf16.msra.mxu0 0
      %833 = vmatprep.subr.bf16.mxu0 0
      %834 = vmatpush1.bf16.msra.mxu0 0
      %835 = vmatprep.subr.bf16.mxu0 0
      %836 = vmatpush1.bf16.msra.mxu0 0
      %837 = vmatprep.subr.bf16.mxu0 0
      %838 = vmatpush1.bf16.msra.mxu0 0
      %839 = vmatprep.subr.bf16.mxu0 0
      %840 = vmatpush1.bf16.msra.mxu0 0
      %841 = vmatprep.subr.bf16.mxu0 0
      %842 = vmatpush1.bf16.msra.mxu0 0
      %843 = vmatprep.subr.bf16.mxu0 0
      %844 = vmatpush1.bf16.msra.mxu0 0
      %845 = vmatprep.mubr.bf16.mxu0 0
      %846 = vmatmul.mubr.bf16.gmra.mrb[0].mxu0 %v796
      %v847 = vpop.f32.mrb[0].mxu0
      %v848 = vadd.f32 0.0, %v847
      %v849 = vpop.f32.mrb[0].mxu0
      %v850 = vpop.f32.mrb[0].mxu0
      %v851 = vadd.f32 0.0, %v850
      %v852 = vpop.f32.mrb[0].mxu0
      %853 = vmatprep.mubr.bf16.mxu0 0
      %854 = vmatmul.mubr.bf16.gmra.mrb[0].mxu0 %v799
      %v855 = vpop.f32.mrb[0].mxu0
      %v856 = vadd.f32 0.0, %v855
      %v857 = vpop.f32.mrb[0].mxu0
      %v858 = vpop.f32.mrb[0].mxu0
      %v859 = vadd.f32 0.0, %v858
      %v860 = vpop.f32.mrb[0].mxu0
      %861 = vmatprep.mubr.bf16.mxu0 0
      %862 = vmatmul.mubr.bf16.gmra.mrb[0].mxu0 %v802
      %v863 = vpop.f32.mrb[0].mxu0
      %v864 = vadd.f32 0.0, %v863
      %v865 = vpop.f32.mrb[0].mxu0
      %v866 = vpop.f32.mrb[0].mxu0
      %v867 = vadd.f32 0.0, %v866
      %v868 = vpop.f32.mrb[0].mxu0
      %869 = vmatprep.mubr.bf16.mxu0 0
      %870 = vmatmul.mubr.bf16.gmra.mrb[0].mxu0 %v805
      %v871 = vpop.f32.mrb[0].mxu0
      %v872 = vadd.f32 0.0, %v871
      %v873 = vpop.f32.mrb[0].mxu0
      %v874 = vpop.f32.mrb[0].mxu0
      %v875 = vadd.f32 0.0, %v874
      %v876 = vpop.f32.mrb[0].mxu0
      %877 = vmatprep.mubr.bf16.mxu0 0
      %878 = vmatmul.mubr.bf16.gmra.mrb[0].mxu0 %v808
      %v879 = vpop.f32.mrb[0].mxu0
      %v880 = vadd.f32 0.0, %v879
      %v881 = vpop.f32.mrb[0].mxu0
      %v882 = vpop.f32.mrb[0].mxu0
      %v883 = vadd.f32 0.0, %v882
      %v884 = vpop.f32.mrb[0].mxu0
      %885 = vmatprep.mubr.bf16.mxu0 0
      %886 = vmatmul.mubr.bf16.gmra.mrb[0].mxu0 %v811
      %v887 = vpop.f32.mrb[0].mxu0
      %v888 = vadd.f32 0.0, %v887
      %v889 = vpop.f32.mrb[0].mxu0
      %v890 = vpop.f32.mrb[0].mxu0
      %v891 = vadd.f32 0.0, %v890
      %v892 = vpop.f32.mrb[0].mxu0
      %893 = vdwg.mxu0
      %v894 = vpack.c.bf16 %v753, %v750
      %v895 = vpack.c.bf16 %v761, %v758
      %v896 = vpack.c.bf16 %v769, %v766
      %v897 = vpack.c.bf16 %v777, %v774
      %vm898 = vcmask 523264
      %v900 = vsel %vm898, %v525, 0
      %v903 = vsel %vm898, %v526, 0
      %v906 = vsel %vm898, %v527, 0
      %v909 = vsel %vm898, %v528, 0
      %v912 = vsel %vm898, %v529, 0
      %v915 = vsel %vm898, %v530, 0
      %917 = vmatprep.subr.bf16.mxu0 0
      %918 = vmatpush1.bf16.msra.mxu0 %v894
      %919 = vmatprep.subr.bf16.mxu0 0
      %920 = vmatpush1.bf16.msra.mxu0 %v895
      %921 = vmatprep.subr.bf16.mxu0 0
      %922 = vmatpush1.bf16.msra.mxu0 %v896
      %923 = vmatprep.subr.bf16.mxu0 0
      %924 = vmatpush1.bf16.msra.mxu0 %v897
      %925 = vmatprep.subr.bf16.mxu0 0
      %926 = vmatpush1.bf16.msra.mxu0 0
      %927 = vmatprep.subr.bf16.mxu0 0
      %928 = vmatpush1.bf16.msra.mxu0 0
      %929 = vmatprep.subr.bf16.mxu0 0
      %930 = vmatpush1.bf16.msra.mxu0 0
      %931 = vmatprep.subr.bf16.mxu0 0
      %932 = vmatpush1.bf16.msra.mxu0 0
      %933 = vmatprep.subr.bf16.mxu0 0
      %934 = vmatpush1.bf16.msra.mxu0 0
      %935 = vmatprep.subr.bf16.mxu0 0
      %936 = vmatpush1.bf16.msra.mxu0 0
      %937 = vmatprep.subr.bf16.mxu0 0
      %938 = vmatpush1.bf16.msra.mxu0 0
      %939 = vmatprep.subr.bf16.mxu0 0
      %940 = vmatpush1.bf16.msra.mxu0 0
      %941 = vmatprep.subr.bf16.mxu0 0
      %942 = vmatpush1.bf16.msra.mxu0 0
      %943 = vmatprep.subr.bf16.mxu0 0
      %944 = vmatpush1.bf16.msra.mxu0 0
      %945 = vmatprep.subr.bf16.mxu0 0
      %946 = vmatpush1.bf16.msra.mxu0 0
      %947 = vmatprep.subr.bf16.mxu0 0
      %948 = vmatpush1.bf16.msra.mxu0 0
      %949 = vmatprep.mubr.bf16.mxu0 0
      %950 = vmatmul.mubr.bf16.gmra.mrb[0].mxu0 %v900
      %v951 = vpop.f32.mrb[0].mxu0
      %v952 = vadd.f32 %v848, %v951
      %v953 = vpop.f32.mrb[0].mxu0
      %v954 = vpop.f32.mrb[0].mxu0
      %v955 = vadd.f32 %v851, %v954
      %v956 = vpop.f32.mrb[0].mxu0
      %957 = vmatprep.mubr.bf16.mxu0 0
      %958 = vmatmul.mubr.bf16.gmra.mrb[0].mxu0 %v903
      %v959 = vpop.f32.mrb[0].mxu0
      %v960 = vadd.f32 %v856, %v959
      %v961 = vpop.f32.mrb[0].mxu0
      %v962 = vpop.f32.mrb[0].mxu0
      %v963 = vadd.f32 %v859, %v962
      %v964 = vpop.f32.mrb[0].mxu0
      %965 = vmatprep.mubr.bf16.mxu0 0
      %966 = vmatmul.mubr.bf16.gmra.mrb[0].mxu0 %v906
      %v967 = vpop.f32.mrb[0].mxu0
      %v968 = vadd.f32 %v864, %v967
      %v969 = vpop.f32.mrb[0].mxu0
      %v970 = vpop.f32.mrb[0].mxu0
      %v971 = vadd.f32 %v867, %v970
      %v972 = vpop.f32.mrb[0].mxu0
      %973 = vmatprep.mubr.bf16.mxu0 0
      %974 = vmatmul.mubr.bf16.gmra.mrb[0].mxu0 %v909
      %v975 = vpop.f32.mrb[0].mxu0
      %v976 = vadd.f32 %v872, %v975
      %v977 = vpop.f32.mrb[0].mxu0
      %v978 = vpop.f32.mrb[0].mxu0
      %v979 = vadd.f32 %v875, %v978
      %v980 = vpop.f32.mrb[0].mxu0
      %981 = vmatprep.mubr.bf16.mxu0 0
      %982 = vmatmul.mubr.bf16.gmra.mrb[0].mxu0 %v912
      %v983 = vpop.f32.mrb[0].mxu0
      %v984 = vadd.f32 %v880, %v983
      %v985 = vpop.f32.mrb[0].mxu0
      %v986 = vpop.f32.mrb[0].mxu0
      %v987 = vadd.f32 %v883, %v986
      %v988 = vpop.f32.mrb[0].mxu0
      %989 = vmatprep.mubr.bf16.mxu0 0
      %990 = vmatmul.mubr.bf16.gmra.mrb[0].mxu0 %v915
      %v991 = vpop.f32.mrb[0].mxu0
      %v992 = vadd.f32 %v888, %v991
      %v993 = vpop.f32.mrb[0].mxu0
      %v994 = vpop.f32.mrb[0].mxu0
      %v995 = vadd.f32 %v891, %v994
      %v996 = vpop.f32.mrb[0].mxu0
      %997 = vdwg.mxu0
      %v998 = vlaneseq
      %v999 = vshrl.u32 %v998, 7
      %v1000 = vsub.s32 0, %v999
      %v1001 = vrot.slane %v448, %v1000
      %v1002 = vadd.f32 %v952, %v1001
      %v1003 = vadd.f32 %v955, %v1001
      %v1004 = vadd.f32 %v960, %v1001
      %v1005 = vadd.f32 %v963, %v1001
      %v1006 = vadd.f32 %v968, %v1001
      %v1007 = vadd.f32 %v971, %v1001
      %v1008 = vadd.f32 %v976, %v1001
      %v1009 = vadd.f32 %v979, %v1001
      %v1010 = vadd.f32 %v984, %v1001
      %v1011 = vadd.f32 %v987, %v1001
      %v1012 = vadd.f32 %v992, %v1001
      %v1013 = vadd.f32 %v995, %v1001
      %v1014 = vmax.f32 %v1002, 0.0
      %v1015 = vmax.f32 %v1003, 0.0
      %v1016 = vmax.f32 %v1004, 0.0
      %v1017 = vmax.f32 %v1005, 0.0
      %v1018 = vmax.f32 %v1006, 0.0
      %v1019 = vmax.f32 %v1007, 0.0
      %v1020 = vmax.f32 %v1008, 0.0
      %v1021 = vmax.f32 %v1009, 0.0
      %v1022 = vmax.f32 %v1010, 0.0
      %v1023 = vmax.f32 %v1011, 0.0
      %v1024 = vmax.f32 %v1012, 0.0
      %v1025 = vmax.f32 %v1013, 0.0
      %v1026 = vpack.c.bf16 %v1015, %v1014
      %v1027 = vpack.c.bf16 %v1017, %v1016
      %v1028 = vpack.c.bf16 %v1019, %v1018
      %v1029 = vpack.c.bf16 %v1021, %v1020
      %v1030 = vpack.c.bf16 %v1023, %v1022
      %v1031 = vpack.c.bf16 %v1025, %v1024
      %vm1032 = vcmask 785408
      %v1034 = vsel %vm1032, %v672, 0
      %v1037 = vsel %vm1032, %v673, 0
      %v1040 = vsel %vm1032, %v674, 0
      %v1043 = vsel %vm1032, %v675, 0
      %v1046 = vsel %vm1032, %v676, 0
      %v1049 = vsel %vm1032, %v677, 0
      %1051 = vmatprep.subr.bf16.mxu0 0
      %1052 = vmatpush1.bf16.msra.mxu0 %v1026
      %1053 = vmatprep.subr.bf16.mxu0 0
      %1054 = vmatpush1.bf16.msra.mxu0 %v1027
      %1055 = vmatprep.subr.bf16.mxu0 0
      %1056 = vmatpush1.bf16.msra.mxu0 %v1028
      %1057 = vmatprep.subr.bf16.mxu0 0
      %1058 = vmatpush1.bf16.msra.mxu0 %v1029
      %1059 = vmatprep.subr.bf16.mxu0 0
      %1060 = vmatpush1.bf16.msra.mxu0 %v1030
      %1061 = vmatprep.subr.bf16.mxu0 0
      %1062 = vmatpush1.bf16.msra.mxu0 %v1031
      %1063 = vmatprep.subr.bf16.mxu0 0
      %1064 = vmatpush1.bf16.msra.mxu0 0
      %1065 = vmatprep.subr.bf16.mxu0 0
      %1066 = vmatpush1.bf16.msra.mxu0 0
      %1067 = vmatprep.subr.bf16.mxu0 0
      %1068 = vmatpush1.bf16.msra.mxu0 0
      %1069 = vmatprep.subr.bf16.mxu0 0
      %1070 = vmatpush1.bf16.msra.mxu0 0
      %1071 = vmatprep.subr.bf16.mxu0 0
      %1072 = vmatpush1.bf16.msra.mxu0 0
      %1073 = vmatprep.subr.bf16.mxu0 0
      %1074 = vmatpush1.bf16.msra.mxu0 0
      %1075 = vmatprep.subr.bf16.mxu0 0
      %1076 = vmatpush1.bf16.msra.mxu0 0
      %1077 = vmatprep.subr.bf16.mxu0 0
      %1078 = vmatpush1.bf16.msra.mxu0 0
      %1079 = vmatprep.subr.bf16.mxu0 0
      %1080 = vmatpush1.bf16.msra.mxu0 0
      %1081 = vmatprep.subr.bf16.mxu0 0
      %1082 = vmatpush1.bf16.msra.mxu0 0
      %1083 = vmatprep.mubr.bf16.mxu0 0
      %1084 = vmatmul.mubr.bf16.gmra.mrb[0].mxu0 %v1034
      %v1085 = vpop.f32.mrb[0].mxu0
      %v1086 = vadd.f32 0.0, %v1085
      %v1087 = vpop.f32.mrb[0].mxu0
      %v1088 = vpop.f32.mrb[0].mxu0
      %v1089 = vadd.f32 0.0, %v1088
      %v1090 = vpop.f32.mrb[0].mxu0
      %1091 = vmatprep.mubr.bf16.mxu0 0
      %1092 = vmatmul.mubr.bf16.gmra.mrb[0].mxu0 %v1037
      %v1093 = vpop.f32.mrb[0].mxu0
      %v1094 = vadd.f32 0.0, %v1093
      %v1095 = vpop.f32.mrb[0].mxu0
      %v1096 = vpop.f32.mrb[0].mxu0
      %v1097 = vadd.f32 0.0, %v1096
      %v1098 = vpop.f32.mrb[0].mxu0
      %1099 = vmatprep.mubr.bf16.mxu0 0
      %1100 = vmatmul.mubr.bf16.gmra.mrb[0].mxu0 %v1040
      %v1101 = vpop.f32.mrb[0].mxu0
      %v1102 = vadd.f32 0.0, %v1101
      %v1103 = vpop.f32.mrb[0].mxu0
      %v1104 = vpop.f32.mrb[0].mxu0
      %v1105 = vadd.f32 0.0, %v1104
      %v1106 = vpop.f32.mrb[0].mxu0
      %1107 = vmatprep.mubr.bf16.mxu0 0
      %1108 = vmatmul.mubr.bf16.gmra.mrb[0].mxu0 %v1043
      %v1109 = vpop.f32.mrb[0].mxu0
      %v1110 = vadd.f32 0.0, %v1109
      %v1111 = vpop.f32.mrb[0].mxu0
      %v1112 = vpop.f32.mrb[0].mxu0
      %v1113 = vadd.f32 0.0, %v1112
      %v1114 = vpop.f32.mrb[0].mxu0
      %1115 = vmatprep.mubr.bf16.mxu0 0
      %1116 = vmatmul.mubr.bf16.gmra.mrb[0].mxu0 %v1046
      %v1117 = vpop.f32.mrb[0].mxu0
      %v1118 = vadd.f32 0.0, %v1117
      %v1119 = vpop.f32.mrb[0].mxu0
      %v1120 = vpop.f32.mrb[0].mxu0
      %v1121 = vadd.f32 0.0, %v1120
      %v1122 = vpop.f32.mrb[0].mxu0
      %1123 = vmatprep.mubr.bf16.mxu0 0
      %1124 = vmatmul.mubr.bf16.gmra.mrb[0].mxu0 %v1049
      %v1125 = vpop.f32.mrb[0].mxu0
      %v1126 = vadd.f32 0.0, %v1125
      %v1127 = vpop.f32.mrb[0].mxu0
      %v1128 = vpop.f32.mrb[0].mxu0
      %v1129 = vadd.f32 0.0, %v1128
      %v1130 = vpop.f32.mrb[0].mxu0
      %1131 = vdwg.mxu0
      %v1132 = vpack.c.bf16 %v1089, %v1086
      %v1133 = vpack.c.bf16 %v1097, %v1094
      %v1134 = vpack.c.bf16 %v1105, %v1102
      %v1135 = vpack.c.bf16 %v1113, %v1110
      %v1136 = vpack.c.bf16 %v1121, %v1118
      %v1137 = vpack.c.bf16 %v1129, %v1126
      %v1138 = vlaneseq
      %v1139 = vshrl.u32 %v1138, 7
      %v1140 = vsub.s32 0, %v1139
      %v1141 = vrot.slane %v449, %v1140
      %v1146 = vunpack.c.l.b16 %v682
      %v1147 = vunpack.c.l.b16 %v683
      %v1148 = vunpack.c.l.b16 %v684
      %v1149 = vunpack.c.l.b16 %v685
      %v1150 = vpack.c.b16 %v1147, %v1146
      %v1151 = vpack.c.b16 %v1149, %v1148
      %v1155 = vsel %vm702, %v1132, 0
      %v1158 = vsel %vm702, %v1133, 0
      %v1161 = vsel %vm702, %v1134, 0
      %v1164 = vsel %vm702, %v1135, 0
      %v1167 = vsel %vm702, %v1136, 0
      %v1170 = vsel %vm702, %v1137, 0
      %1172 = vmatprep.subr.bf16.mxu0 0
      %1173 = vmatpush1.bf16.msra.mxu0 %v1150
      %1174 = vmatprep.subr.bf16.mxu0 0
      %1175 = vmatpush1.bf16.msra.mxu0 %v1151
      %1176 = vmatprep.subr.bf16.mxu0 0
      %1177 = vmatpush1.bf16.msra.mxu0 0
      %1178 = vmatprep.subr.bf16.mxu0 0
      %1179 = vmatpush1.bf16.msra.mxu0 0
      %1180 = vmatprep.subr.bf16.mxu0 0
      %1181 = vmatpush1.bf16.msra.mxu0 0
      %1182 = vmatprep.subr.bf16.mxu0 0
      %1183 = vmatpush1.bf16.msra.mxu0 0
      %1184 = vmatprep.subr.bf16.mxu0 0
      %1185 = vmatpush1.bf16.msra.mxu0 0
      %1186 = vmatprep.subr.bf16.mxu0 0
      %1187 = vmatpush1.bf16.msra.mxu0 0
      %1188 = vmatprep.subr.bf16.mxu0 0
      %1189 = vmatpush1.bf16.msra.mxu0 0
      %1190 = vmatprep.subr.bf16.mxu0 0
      %1191 = vmatpush1.bf16.msra.mxu0 0
      %1192 = vmatprep.subr.bf16.mxu0 0
      %1193 = vmatpush1.bf16.msra.mxu0 0
      %1194 = vmatprep.subr.bf16.mxu0 0
      %1195 = vmatpush1.bf16.msra.mxu0 0
      %1196 = vmatprep.subr.bf16.mxu0 0
      %1197 = vmatpush1.bf16.msra.mxu0 0
      %1198 = vmatprep.subr.bf16.mxu0 0
      %1199 = vmatpush1.bf16.msra.mxu0 0
      %1200 = vmatprep.subr.bf16.mxu0 0
      %1201 = vmatpush1.bf16.msra.mxu0 0
      %1202 = vmatprep.subr.bf16.mxu0 0
      %1203 = vmatpush1.bf16.msra.mxu0 0
      %1204 = vmatprep.mubr.bf16.mxu0 0
      %1205 = vmatmul.mubr.bf16.gmra.mrb[0].mxu0 %v1155
      %v1206 = vpop.f32.mrb[0].mxu0
      %v1207 = vadd.f32 %v1141, %v1206
      %v1208 = vpop.f32.mrb[0].mxu0
      %v1209 = vpop.f32.mrb[0].mxu0
      %v1210 = vadd.f32 %v1141, %v1209
      %v1211 = vpop.f32.mrb[0].mxu0
      %1212 = vmatprep.mubr.bf16.mxu0 0
      %1213 = vmatmul.mubr.bf16.gmra.mrb[0].mxu0 %v1158
      %v1214 = vpop.f32.mrb[0].mxu0
      %v1215 = vadd.f32 %v1141, %v1214
      %v1216 = vpop.f32.mrb[0].mxu0
      %v1217 = vpop.f32.mrb[0].mxu0
      %v1218 = vadd.f32 %v1141, %v1217
      %v1219 = vpop.f32.mrb[0].mxu0
      %1220 = vmatprep.mubr.bf16.mxu0 0
      %1221 = vmatmul.mubr.bf16.gmra.mrb[0].mxu0 %v1161
      %v1222 = vpop.f32.mrb[0].mxu0
      %v1223 = vadd.f32 %v1141, %v1222
      %v1224 = vpop.f32.mrb[0].mxu0
      %v1225 = vpop.f32.mrb[0].mxu0
      %v1226 = vadd.f32 %v1141, %v1225
      %v1227 = vpop.f32.mrb[0].mxu0
      %1228 = vmatprep.mubr.bf16.mxu0 0
      %1229 = vmatmul.mubr.bf16.gmra.mrb[0].mxu0 %v1164
      %v1230 = vpop.f32.mrb[0].mxu0
      %v1231 = vadd.f32 %v1141, %v1230
      %v1232 = vpop.f32.mrb[0].mxu0
      %v1233 = vpop.f32.mrb[0].mxu0
      %v1234 = vadd.f32 %v1141, %v1233
      %v1235 = vpop.f32.mrb[0].mxu0
      %1236 = vmatprep.mubr.bf16.mxu0 0
      %1237 = vmatmul.mubr.bf16.gmra.mrb[0].mxu0 %v1167
      %v1238 = vpop.f32.mrb[0].mxu0
      %v1239 = vadd.f32 %v1141, %v1238
      %v1240 = vpop.f32.mrb[0].mxu0
      %v1241 = vpop.f32.mrb[0].mxu0
      %v1242 = vadd.f32 %v1141, %v1241
      %v1243 = vpop.f32.mrb[0].mxu0
      %1244 = vmatprep.mubr.bf16.mxu0 0
      %1245 = vmatmul.mubr.bf16.gmra.mrb[0].mxu0 %v1170
      %v1246 = vpop.f32.mrb[0].mxu0
      %v1247 = vadd.f32 %v1141, %v1246
      %v1248 = vpop.f32.mrb[0].mxu0
      %v1249 = vpop.f32.mrb[0].mxu0
      %v1250 = vadd.f32 %v1141, %v1249
      %v1251 = vpop.f32.mrb[0].mxu0
      %1252 = vdwg.mxu0
      %v1253 = vadd.f32 %v1002, %v1207
      %v1254 = vadd.f32 %v1003, %v1210
      %v1255 = vadd.f32 %v1004, %v1215
      %v1256 = vadd.f32 %v1005, %v1218
      %v1257 = vadd.f32 %v1006, %v1223
      %v1258 = vadd.f32 %v1007, %v1226
      %v1259 = vadd.f32 %v1008, %v1231
      %v1260 = vadd.f32 %v1009, %v1234
      %v1261 = vadd.f32 %v1010, %v1239
      %v1262 = vadd.f32 %v1011, %v1242
      %v1263 = vadd.f32 %v1012, %v1247
      %v1264 = vadd.f32 %v1013, %v1250
      %v1265 = vmax.f32 %v1253, 0.0
      %v1266 = vmax.f32 %v1254, 0.0
      %v1267 = vmax.f32 %v1255, 0.0
      %v1268 = vmax.f32 %v1256, 0.0
      %v1269 = vmax.f32 %v1257, 0.0
      %v1270 = vmax.f32 %v1258, 0.0
      %v1271 = vmax.f32 %v1259, 0.0
      %v1272 = vmax.f32 %v1260, 0.0
      %v1273 = vmax.f32 %v1261, 0.0
      %v1274 = vmax.f32 %v1262, 0.0
      %v1275 = vmax.f32 %v1263, 0.0
      %v1276 = vmax.f32 %v1264, 0.0
      %v1277 = vpack.c.bf16 %v1266, %v1265
      %v1278 = vpack.c.bf16 %v1268, %v1267
      %v1279 = vpack.c.bf16 %v1270, %v1269
      %v1280 = vpack.c.bf16 %v1272, %v1271
      %v1281 = vpack.c.bf16 %v1274, %v1273
      %v1282 = vpack.c.bf16 %v1276, %v1275
      %1283 = vmatprep.subr.bf16.mxu0 0
      %1284 = vmatpush1.bf16.msra.mxu0 %v1277
      %1285 = vmatprep.subr.bf16.mxu0 0
      %1286 = vmatpush1.bf16.msra.mxu0 %v1278
      %1287 = vmatprep.subr.bf16.mxu0 0
      %1288 = vmatpush1.bf16.msra.mxu0 %v1279
      %1289 = vmatprep.subr.bf16.mxu0 0
      %1290 = vmatpush1.bf16.msra.mxu0 %v1280
      %1291 = vmatprep.subr.bf16.mxu0 0
      %1292 = vmatpush1.bf16.msra.mxu0 %v1281
      %1293 = vmatprep.subr.bf16.mxu0 0
      %1294 = vmatpush1.bf16.msra.mxu0 %v1282
      %1295 = vmatprep.subr.bf16.mxu0 0
      %1296 = vmatpush1.bf16.msra.mxu0 0
      %1297 = vmatprep.subr.bf16.mxu0 0
      %1298 = vmatpush1.bf16.msra.mxu0 0
      %1299 = vmatprep.subr.bf16.mxu0 0
      %1300 = vmatpush1.bf16.msra.mxu0 0
      %1301 = vmatprep.subr.bf16.mxu0 0
      %1302 = vmatpush1.bf16.msra.mxu0 0
      %1303 = vmatprep.subr.bf16.mxu0 0
      %1304 = vmatpush1.bf16.msra.mxu0 0
      %1305 = vmatprep.subr.bf16.mxu0 0
      %1306 = vmatpush1.bf16.msra.mxu0 0
      %1307 = vmatprep.subr.bf16.mxu0 0
      %1308 = vmatpush1.bf16.msra.mxu0 0
      %1309 = vmatprep.subr.bf16.mxu0 0
      %1310 = vmatpush1.bf16.msra.mxu0 0
      %1311 = vmatprep.subr.bf16.mxu0 0
      %1312 = vmatpush1.bf16.msra.mxu0 0
      %1313 = vmatprep.subr.bf16.mxu0 0
      %1314 = vmatpush1.bf16.msra.mxu0 0
      %1315 = vmatprep.mubr.bf16.mxu0 0
      %1316 = vmatmul.mubr.bf16.gmra.mrb[0].mxu0 %v1034
      %v1317 = vpop.f32.mrb[0].mxu0
      %v1318 = vadd.f32 0.0, %v1317
      %v1319 = vpop.f32.mrb[0].mxu0
      %v1320 = vpop.f32.mrb[0].mxu0
      %v1321 = vadd.f32 0.0, %v1320
      %v1322 = vpop.f32.mrb[0].mxu0
      %1323 = vmatprep.mubr.bf16.mxu0 0
      %1324 = vmatmul.mubr.bf16.gmra.mrb[0].mxu0 %v1037
      %v1325 = vpop.f32.mrb[0].mxu0
      %v1326 = vadd.f32 0.0, %v1325
      %v1327 = vpop.f32.mrb[0].mxu0
      %v1328 = vpop.f32.mrb[0].mxu0
      %v1329 = vadd.f32 0.0, %v1328
      %v1330 = vpop.f32.mrb[0].mxu0
      %1331 = vmatprep.mubr.bf16.mxu0 0
      %1332 = vmatmul.mubr.bf16.gmra.mrb[0].mxu0 %v1040
      %v1333 = vpop.f32.mrb[0].mxu0
      %v1334 = vadd.f32 0.0, %v1333
      %v1335 = vpop.f32.mrb[0].mxu0
      %v1336 = vpop.f32.mrb[0].mxu0
      %v1337 = vadd.f32 0.0, %v1336
      %v1338 = vpop.f32.mrb[0].mxu0
      %1339 = vmatprep.mubr.bf16.mxu0 0
      %1340 = vmatmul.mubr.bf16.gmra.mrb[0].mxu0 %v1043
      %v1341 = vpop.f32.mrb[0].mxu0
      %v1342 = vadd.f32 0.0, %v1341
      %v1343 = vpop.f32.mrb[0].mxu0
      %v1344 = vpop.f32.mrb[0].mxu0
      %v1345 = vadd.f32 0.0, %v1344
      %v1346 = vpop.f32.mrb[0].mxu0
      %1347 = vmatprep.mubr.bf16.mxu0 0
      %1348 = vmatmul.mubr.bf16.gmra.mrb[0].mxu0 %v1046
      %v1349 = vpop.f32.mrb[0].mxu0
      %v1350 = vadd.f32 0.0, %v1349
      %v1351 = vpop.f32.mrb[0].mxu0
      %v1352 = vpop.f32.mrb[0].mxu0
      %v1353 = vadd.f32 0.0, %v1352
      %v1354 = vpop.f32.mrb[0].mxu0
      %1355 = vmatprep.mubr.bf16.mxu0 0
      %1356 = vmatmul.mubr.bf16.gmra.mrb[0].mxu0 %v1049
      %v1357 = vpop.f32.mrb[0].mxu0
      %v1358 = vadd.f32 0.0, %v1357
      %v1359 = vpop.f32.mrb[0].mxu0
      %v1360 = vpop.f32.mrb[0].mxu0
      %v1361 = vadd.f32 0.0, %v1360
      %v1362 = vpop.f32.mrb[0].mxu0
      %1363 = vdwg.mxu0
      %v1364 = vpack.c.bf16 %v1321, %v1318
      %v1365 = vpack.c.bf16 %v1329, %v1326
      %v1366 = vpack.c.bf16 %v1337, %v1334
      %v1367 = vpack.c.bf16 %v1345, %v1342
      %v1368 = vpack.c.bf16 %v1353, %v1350
      %v1369 = vpack.c.bf16 %v1361, %v1358
      %v1371 = vsel %vm702, %v1364, 0
      %v1374 = vsel %vm702, %v1365, 0
      %v1377 = vsel %vm702, %v1366, 0
      %v1380 = vsel %vm702, %v1367, 0
      %v1383 = vsel %vm702, %v1368, 0
      %v1386 = vsel %vm702, %v1369, 0
      %1388 = vmatprep.subr.bf16.mxu0 0
      %1389 = vmatpush1.bf16.msra.mxu0 %v1150
      %1390 = vmatprep.subr.bf16.mxu0 0
      %1391 = vmatpush1.bf16.msra.mxu0 %v1151
      %1392 = vmatprep.subr.bf16.mxu0 0
      %1393 = vmatpush1.bf16.msra.mxu0 0
      %1394 = vmatprep.subr.bf16.mxu0 0
      %1395 = vmatpush1.bf16.msra.mxu0 0
      %1396 = vmatprep.subr.bf16.mxu0 0
      %1397 = vmatpush1.bf16.msra.mxu0 0
      %1398 = vmatprep.subr.bf16.mxu0 0
      %1399 = vmatpush1.bf16.msra.mxu0 0
      %1400 = vmatprep.subr.bf16.mxu0 0
      %1401 = vmatpush1.bf16.msra.mxu0 0
      %1402 = vmatprep.subr.bf16.mxu0 0
      %1403 = vmatpush1.bf16.msra.mxu0 0
      %1404 = vmatprep.subr.bf16.mxu0 0
      %1405 = vmatpush1.bf16.msra.mxu0 0
      %1406 = vmatprep.subr.bf16.mxu0 0
      %1407 = vmatpush1.bf16.msra.mxu0 0
      %1408 = vmatprep.subr.bf16.mxu0 0
      %1409 = vmatpush1.bf16.msra.mxu0 0
      %1410 = vmatprep.subr.bf16.mxu0 0
      %1411 = vmatpush1.bf16.msra.mxu0 0
      %1412 = vmatprep.subr.bf16.mxu0 0
      %1413 = vmatpush1.bf16.msra.mxu0 0
      %1414 = vmatprep.subr.bf16.mxu0 0
      %1415 = vmatpush1.bf16.msra.mxu0 0
      %1416 = vmatprep.subr.bf16.mxu0 0
      %1417 = vmatpush1.bf16.msra.mxu0 0
      %1418 = vmatprep.subr.bf16.mxu0 0
      %1419 = vmatpush1.bf16.msra.mxu0 0
      %1420 = vmatprep.mubr.bf16.mxu0 0
      %1421 = vmatmul.mubr.bf16.gmra.mrb[0].mxu0 %v1371
      %v1422 = vpop.f32.mrb[0].mxu0
      %v1423 = vadd.f32 %v1141, %v1422
      %v1424 = vpop.f32.mrb[0].mxu0
      %v1425 = vpop.f32.mrb[0].mxu0
      %v1426 = vadd.f32 %v1141, %v1425
      %v1427 = vpop.f32.mrb[0].mxu0
      %1428 = vmatprep.mubr.bf16.mxu0 0
      %1429 = vmatmul.mubr.bf16.gmra.mrb[0].mxu0 %v1374
      %v1430 = vpop.f32.mrb[0].mxu0
      %v1431 = vadd.f32 %v1141, %v1430
      %v1432 = vpop.f32.mrb[0].mxu0
      %v1433 = vpop.f32.mrb[0].mxu0
      %v1434 = vadd.f32 %v1141, %v1433
      %v1435 = vpop.f32.mrb[0].mxu0
      %1436 = vmatprep.mubr.bf16.mxu0 0
      %1437 = vmatmul.mubr.bf16.gmra.mrb[0].mxu0 %v1377
      %v1438 = vpop.f32.mrb[0].mxu0
      %v1439 = vadd.f32 %v1141, %v1438
      %v1440 = vpop.f32.mrb[0].mxu0
      %v1441 = vpop.f32.mrb[0].mxu0
      %v1442 = vadd.f32 %v1141, %v1441
      %v1443 = vpop.f32.mrb[0].mxu0
      %1444 = vmatprep.mubr.bf16.mxu0 0
      %1445 = vmatmul.mubr.bf16.gmra.mrb[0].mxu0 %v1380
      %v1446 = vpop.f32.mrb[0].mxu0
      %v1447 = vadd.f32 %v1141, %v1446
      %v1448 = vpop.f32.mrb[0].mxu0
      %v1449 = vpop.f32.mrb[0].mxu0
      %v1450 = vadd.f32 %v1141, %v1449
      %v1451 = vpop.f32.mrb[0].mxu0
      %1452 = vmatprep.mubr.bf16.mxu0 0
      %1453 = vmatmul.mubr.bf16.gmra.mrb[0].mxu0 %v1383
      %v1454 = vpop.f32.mrb[0].mxu0
      %v1455 = vadd.f32 %v1141, %v1454
      %v1456 = vpop.f32.mrb[0].mxu0
      %v1457 = vpop.f32.mrb[0].mxu0
      %v1458 = vadd.f32 %v1141, %v1457
      %v1459 = vpop.f32.mrb[0].mxu0
      %1460 = vmatprep.mubr.bf16.mxu0 0
      %1461 = vmatmul.mubr.bf16.gmra.mrb[0].mxu0 %v1386
      %v1462 = vpop.f32.mrb[0].mxu0
      %v1463 = vadd.f32 %v1141, %v1462
      %v1464 = vpop.f32.mrb[0].mxu0
      %v1465 = vpop.f32.mrb[0].mxu0
      %v1466 = vadd.f32 %v1141, %v1465
      %v1467 = vpop.f32.mrb[0].mxu0
      %1468 = vdwg.mxu0
      %v1469 = vadd.f32 %v1002, %v1423
      %v1470 = vadd.f32 %v1003, %v1426
      %v1471 = vadd.f32 %v1004, %v1431
      %v1472 = vadd.f32 %v1005, %v1434
      %v1473 = vadd.f32 %v1006, %v1439
      %v1474 = vadd.f32 %v1007, %v1442
      %v1475 = vadd.f32 %v1008, %v1447
      %v1476 = vadd.f32 %v1009, %v1450
      %v1477 = vadd.f32 %v1010, %v1455
      %v1478 = vadd.f32 %v1011, %v1458
      %v1479 = vadd.f32 %v1012, %v1463
      %v1480 = vadd.f32 %v1013, %v1466
      %v1481 = vmax.f32 %v1469, 0.0
      %v1482 = vmax.f32 %v1470, 0.0
      %v1483 = vmax.f32 %v1471, 0.0
      %v1484 = vmax.f32 %v1472, 0.0
      %v1485 = vmax.f32 %v1473, 0.0
      %v1486 = vmax.f32 %v1474, 0.0
      %v1487 = vmax.f32 %v1475, 0.0
      %v1488 = vmax.f32 %v1476, 0.0
      %v1489 = vmax.f32 %v1477, 0.0
      %v1490 = vmax.f32 %v1478, 0.0
      %v1491 = vmax.f32 %v1479, 0.0
      %v1492 = vmax.f32 %v1480, 0.0
      %v1493 = vpack.c.bf16 %v1482, %v1481
      %v1494 = vpack.c.bf16 %v1484, %v1483
      %v1495 = vpack.c.bf16 %v1486, %v1485
      %v1496 = vpack.c.bf16 %v1488, %v1487
      %v1497 = vpack.c.bf16 %v1490, %v1489
      %v1498 = vpack.c.bf16 %v1492, %v1491
      %v1500 = vsel %vm1032, %v568, 0
      %v1503 = vsel %vm1032, %v569, 0
      %v1506 = vsel %vm1032, %v570, 0
      %v1509 = vsel %vm1032, %v571, 0
      %1511 = vmatprep.subr.bf16.mxu0 0
      %1512 = vmatpush1.bf16.msra.mxu0 %v1493
      %1513 = vmatprep.subr.bf16.mxu0 0
      %1514 = vmatpush1.bf16.msra.mxu0 %v1494
      %1515 = vmatprep.subr.bf16.mxu0 0
      %1516 = vmatpush1.bf16.msra.mxu0 %v1495
      %1517 = vmatprep.subr.bf16.mxu0 0
      %1518 = vmatpush1.bf16.msra.mxu0 %v1496
      %1519 = vmatprep.subr.bf16.mxu0 0
      %1520 = vmatpush1.bf16.msra.mxu0 %v1497
      %1521 = vmatprep.subr.bf16.mxu0 0
      %1522 = vmatpush1.bf16.msra.mxu0 %v1498
      %1523 = vmatprep.subr.bf16.mxu0 0
      %1524 = vmatpush1.bf16.msra.mxu0 0
      %1525 = vmatprep.subr.bf16.mxu0 0
      %1526 = vmatpush1.bf16.msra.mxu0 0
      %1527 = vmatprep.subr.bf16.mxu0 0
      %1528 = vmatpush1.bf16.msra.mxu0 0
      %1529 = vmatprep.subr.bf16.mxu0 0
      %1530 = vmatpush1.bf16.msra.mxu0 0
      %1531 = vmatprep.subr.bf16.mxu0 0
      %1532 = vmatpush1.bf16.msra.mxu0 0
      %1533 = vmatprep.subr.bf16.mxu0 0
      %1534 = vmatpush1.bf16.msra.mxu0 0
      %1535 = vmatprep.subr.bf16.mxu0 0
      %1536 = vmatpush1.bf16.msra.mxu0 0
      %1537 = vmatprep.subr.bf16.mxu0 0
      %1538 = vmatpush1.bf16.msra.mxu0 0
      %1539 = vmatprep.subr.bf16.mxu0 0
      %1540 = vmatpush1.bf16.msra.mxu0 0
      %1541 = vmatprep.subr.bf16.mxu0 0
      %1542 = vmatpush1.bf16.msra.mxu0 0
      %1543 = vmatprep.mubr.bf16.mxu0 0
      %1544 = vmatmul.mubr.bf16.gmra.mrb[0].mxu0 %v1500
      %v1545 = vpop.f32.mrb[0].mxu0
      %v1546 = vadd.f32 0.0, %v1545
      %v1547 = vpop.f32.mrb[0].mxu0
      %v1548 = vpop.f32.mrb[0].mxu0
      %v1549 = vadd.f32 0.0, %v1548
      %v1550 = vpop.f32.mrb[0].mxu0
      %1551 = vmatprep.mubr.bf16.mxu0 0
      %1552 = vmatmul.mubr.bf16.gmra.mrb[0].mxu0 %v1503
      %v1553 = vpop.f32.mrb[0].mxu0
      %v1554 = vadd.f32 0.0, %v1553
      %v1555 = vpop.f32.mrb[0].mxu0
      %v1556 = vpop.f32.mrb[0].mxu0
      %v1557 = vadd.f32 0.0, %v1556
      %v1558 = vpop.f32.mrb[0].mxu0
      %1559 = vmatprep.mubr.bf16.mxu0 0
      %1560 = vmatmul.mubr.bf16.gmra.mrb[0].mxu0 %v1506
      %v1561 = vpop.f32.mrb[0].mxu0
      %v1562 = vadd.f32 0.0, %v1561
      %v1563 = vpop.f32.mrb[0].mxu0
      %v1564 = vpop.f32.mrb[0].mxu0
      %v1565 = vadd.f32 0.0, %v1564
      %v1566 = vpop.f32.mrb[0].mxu0
      %1567 = vmatprep.mubr.bf16.mxu0 0
      %1568 = vmatmul.mubr.bf16.gmra.mrb[0].mxu0 %v1509
      %v1569 = vpop.f32.mrb[0].mxu0
      %v1570 = vadd.f32 0.0, %v1569
      %v1571 = vpop.f32.mrb[0].mxu0
      %v1572 = vpop.f32.mrb[0].mxu0
      %v1573 = vadd.f32 0.0, %v1572
      %v1574 = vpop.f32.mrb[0].mxu0
      %1575 = vdwg.mxu0
      %v1576 = vsel %vm702, %v1546, 0.0
      %1577 = vadd.xlane.f32.xlu0 %v1576
      %v1578 = vpop.xlane.xlu0 %1577
      %v1579 = vsel %vm702, %v1549, 0.0
      %1580 = vadd.xlane.f32.xlu0 %v1579
      %v1581 = vpop.xlane.xlu0 %1580
      %v1582 = vsel %vm702, %v1554, 0.0
      %1583 = vadd.xlane.f32.xlu0 %v1582
      %v1584 = vpop.xlane.xlu0 %1583
      %v1585 = vsel %vm702, %v1557, 0.0
      %1586 = vadd.xlane.f32.xlu0 %v1585
      %v1587 = vpop.xlane.xlu0 %1586
      %v1588 = vsel %vm702, %v1562, 0.0
      %1589 = vadd.xlane.f32.xlu0 %v1588
      %v1590 = vpop.xlane.xlu0 %1589
      %v1591 = vsel %vm702, %v1565, 0.0
      %1592 = vadd.xlane.f32.xlu0 %v1591
      %v1593 = vpop.xlane.xlu0 %1592
      %v1594 = vsel %vm702, %v1570, 0.0
      %1595 = vadd.xlane.f32.xlu0 %v1594
      %v1596 = vpop.xlane.xlu0 %1595
      %v1597 = vsel %vm702, %v1573, 0.0
      %1598 = vadd.xlane.f32.xlu0 %v1597
      %v1599 = vpop.xlane.xlu0 %1598
      %vm1600 = vcmp.eq.f32.partialorder %v1578, 0.0
      %vm1601 = vcmp.eq.f32.partialorder %v1581, 0.0
      %vm1602 = vcmp.eq.f32.partialorder %v1584, 0.0
      %vm1603 = vcmp.eq.f32.partialorder %v1587, 0.0
      %vm1604 = vcmp.eq.f32.partialorder %v1590, 0.0
      %vm1605 = vcmp.eq.f32.partialorder %v1593, 0.0
      %vm1606 = vcmp.eq.f32.partialorder %v1596, 0.0
      %vm1607 = vcmp.eq.f32.partialorder %v1599, 0.0
      %v1608 = vsel %vm1600, 1, 0
      %v1609 = vsel %vm1601, 1, 0
      %v1610 = vsel %vm1602, 1, 0
      %v1611 = vsel %vm1603, 1, 0
      %v1612 = vsel %vm1604, 1, 0
      %v1613 = vsel %vm1605, 1, 0
      %v1614 = vsel %vm1606, 1, 0
      %v1615 = vsel %vm1607, 1, 0
      %vm1616 = vcmp.eq.s32.totalorder %v1608, 1
      %vm1617 = vcmp.eq.s32.totalorder %v1609, 1
      %vm1618 = vcmp.eq.s32.totalorder %v1610, 1
      %vm1619 = vcmp.eq.s32.totalorder %v1611, 1
      %vm1620 = vcmp.eq.s32.totalorder %v1612, 1
      %vm1621 = vcmp.eq.s32.totalorder %v1613, 1
      %vm1622 = vcmp.eq.s32.totalorder %v1614, 1
      %vm1623 = vcmp.eq.s32.totalorder %v1615, 1
      %v1624 = vsel %vm1616, %v415, %v1546
      %v1625 = vsel %vm1617, %v416, %v1549
      %v1626 = vsel %vm1618, %v417, %v1554
      %v1627 = vsel %vm1619, %v418, %v1557
      %v1628 = vsel %vm1620, %v419, %v1562
      %v1629 = vsel %vm1621, %v420, %v1565
      %v1630 = vsel %vm1622, %v421, %v1570
      %v1631 = vsel %vm1623, %v422, %v1573
      %v1632 = vld [vmem:[%s7] sm:$0xf]
      %v1633 = vld [vmem:[%s7 + $0x4] sm:$0xf]
      %v1634 = vld [vmem:[%s7 + $0x8] sm:$0xf]
      %v1635 = vld [vmem:[%s7 + $0xc] sm:$0xf]
      %v1636 = vpack.c.bf16 %v1625, %v1624
      %v1637 = vpack.c.bf16 %v1627, %v1626
      %v1638 = vpack.c.bf16 %v1629, %v1628
      %v1639 = vpack.c.bf16 %v1631, %v1630
      %v1640 = vld [vmem:[%s8] sm:$0xf]
      %v1641 = vld [vmem:[%s8 + $0x4] sm:$0xf]
      %v1642 = vld [vmem:[%s8 + $0x8] sm:$0xf]
      %v1643 = vld [vmem:[%s8 + $0xc] sm:$0xf]
      %v1648 = vunpack.c.l.b16 %v1640
      %v1649 = vunpack.c.l.b16 %v1641
      %v1650 = vunpack.c.l.b16 %v1642
      %v1651 = vunpack.c.l.b16 %v1643
      %v1652 = vpack.c.b16 %v1649, %v1648
      %v1653 = vpack.c.b16 %v1651, %v1650
      %v1657 = vsel %vm702, %v1636, 0
      %v1660 = vsel %vm702, %v1637, 0
      %v1663 = vsel %vm702, %v1638, 0
      %v1666 = vsel %vm702, %v1639, 0
      %1668 = vmatprep.subr.bf16.mxu0 0
      %1669 = vmatpush1.bf16.msra.mxu0 %v1652
      %1670 = vmatprep.subr.bf16.mxu0 0
      %1671 = vmatpush1.bf16.msra.mxu0 %v1653
      %1672 = vmatprep.subr.bf16.mxu0 0
      %1673 = vmatpush1.bf16.msra.mxu0 0
      %1674 = vmatprep.subr.bf16.mxu0 0
      %1675 = vmatpush1.bf16.msra.mxu0 0
      %1676 = vmatprep.subr.bf16.mxu0 0
      %1677 = vmatpush1.bf16.msra.mxu0 0
      %1678 = vmatprep.subr.bf16.mxu0 0
      %1679 = vmatpush1.bf16.msra.mxu0 0
      %1680 = vmatprep.subr.bf16.mxu0 0
      %1681 = vmatpush1.bf16.msra.mxu0 0
      %1682 = vmatprep.subr.bf16.mxu0 0
      %1683 = vmatpush1.bf16.msra.mxu0 0
      %1684 = vmatprep.subr.bf16.mxu0 0
      %1685 = vmatpush1.bf16.msra.mxu0 0
      %1686 = vmatprep.subr.bf16.mxu0 0
      %1687 = vmatpush1.bf16.msra.mxu0 0
      %1688 = vmatprep.subr.bf16.mxu0 0
      %1689 = vmatpush1.bf16.msra.mxu0 0
      %1690 = vmatprep.subr.bf16.mxu0 0
      %1691 = vmatpush1.bf16.msra.mxu0 0
      %1692 = vmatprep.subr.bf16.mxu0 0
      %1693 = vmatpush1.bf16.msra.mxu0 0
      %1694 = vmatprep.subr.bf16.mxu0 0
      %1695 = vmatpush1.bf16.msra.mxu0 0
      %1696 = vmatprep.subr.bf16.mxu0 0
      %1697 = vmatpush1.bf16.msra.mxu0 0
      %1698 = vmatprep.subr.bf16.mxu0 0
      %1699 = vmatpush1.bf16.msra.mxu0 0
      %1700 = vmatprep.mubr.bf16.mxu0 0
      %1701 = vmatmul.mubr.bf16.gmra.mrb[0].mxu0 %v1657
      %v1702 = vpop.f32.mrb[0].mxu0
      %v1703 = vadd.f32 0.0, %v1702
      %v1704 = vpop.f32.mrb[0].mxu0
      %v1705 = vpop.f32.mrb[0].mxu0
      %v1706 = vadd.f32 0.0, %v1705
      %v1707 = vpop.f32.mrb[0].mxu0
      %1708 = vmatprep.mubr.bf16.mxu0 0
      %1709 = vmatmul.mubr.bf16.gmra.mrb[0].mxu0 %v1660
      %v1710 = vpop.f32.mrb[0].mxu0
      %v1711 = vadd.f32 0.0, %v1710
      %v1712 = vpop.f32.mrb[0].mxu0
      %v1713 = vpop.f32.mrb[0].mxu0
      %v1714 = vadd.f32 0.0, %v1713
      %v1715 = vpop.f32.mrb[0].mxu0
      %1716 = vmatprep.mubr.bf16.mxu0 0
      %1717 = vmatmul.mubr.bf16.gmra.mrb[0].mxu0 %v1663
      %v1718 = vpop.f32.mrb[0].mxu0
      %v1719 = vadd.f32 0.0, %v1718
      %v1720 = vpop.f32.mrb[0].mxu0
      %v1721 = vpop.f32.mrb[0].mxu0
      %v1722 = vadd.f32 0.0, %v1721
      %v1723 = vpop.f32.mrb[0].mxu0
      %1724 = vmatprep.mubr.bf16.mxu0 0
      %1725 = vmatmul.mubr.bf16.gmra.mrb[0].mxu0 %v1666
      %v1726 = vpop.f32.mrb[0].mxu0
      %v1727 = vadd.f32 0.0, %v1726
      %v1728 = vpop.f32.mrb[0].mxu0
      %v1729 = vpop.f32.mrb[0].mxu0
      %v1730 = vadd.f32 0.0, %v1729
      %v1731 = vpop.f32.mrb[0].mxu0
      %1732 = vdwg.mxu0
      %v1737 = vunpack.c.l.b16 %v1632
      %v1738 = vunpack.c.l.b16 %v1633
      %v1739 = vunpack.c.l.b16 %v1634
      %v1740 = vunpack.c.l.b16 %v1635
      %v1741 = vpack.c.b16 %v1738, %v1737
      %v1742 = vpack.c.b16 %v1740, %v1739
      %1745 = vmatprep.subr.bf16.mxu0 0
      %1746 = vmatpush1.bf16.msra.mxu0 %v1741
      %1747 = vmatprep.subr.bf16.mxu0 0
      %1748 = vmatpush1.bf16.msra.mxu0 %v1742
      %1749 = vmatprep.subr.bf16.mxu0 0
      %1750 = vmatpush1.bf16.msra.mxu0 0
      %1751 = vmatprep.subr.bf16.mxu0 0
      %1752 = vmatpush1.bf16.msra.mxu0 0
      %1753 = vmatprep.subr.bf16.mxu0 0
      %1754 = vmatpush1.bf16.msra.mxu0 0
      %1755 = vmatprep.subr.bf16.mxu0 0
      %1756 = vmatpush1.bf16.msra.mxu0 0
      %1757 = vmatprep.subr.bf16.mxu0 0
      %1758 = vmatpush1.bf16.msra.mxu0 0
      %1759 = vmatprep.subr.bf16.mxu0 0
      %1760 = vmatpush1.bf16.msra.mxu0 0
      %1761 = vmatprep.subr.bf16.mxu0 0
      %1762 = vmatpush1.bf16.msra.mxu0 0
      %1763 = vmatprep.subr.bf16.mxu0 0
      %1764 = vmatpush1.bf16.msra.mxu0 0
      %1765 = vmatprep.subr.bf16.mxu0 0
      %1766 = vmatpush1.bf16.msra.mxu0 0
      %1767 = vmatprep.subr.bf16.mxu0 0
      %1768 = vmatpush1.bf16.msra.mxu0 0
      %1769 = vmatprep.subr.bf16.mxu0 0
      %1770 = vmatpush1.bf16.msra.mxu0 0
      %1771 = vmatprep.subr.bf16.mxu0 0
      %1772 = vmatpush1.bf16.msra.mxu0 0
      %1773 = vmatprep.subr.bf16.mxu0 0
      %1774 = vmatpush1.bf16.msra.mxu0 0
      %1775 = vmatprep.subr.bf16.mxu0 0
      %1776 = vmatpush1.bf16.msra.mxu0 0
      %1777 = vmatprep.mubr.bf16.mxu0 0
      %1778 = vmatmul.mubr.bf16.gmra.mrb[0].mxu0 %v704
      %v1779 = vpop.f32.mrb[0].mxu0
      %v1780 = vadd.f32 %v1703, %v1779
      %v1781 = vpop.f32.mrb[0].mxu0
      %v1782 = vpop.f32.mrb[0].mxu0
      %v1783 = vadd.f32 %v1706, %v1782
      %v1784 = vpop.f32.mrb[0].mxu0
      %1785 = vmatprep.mubr.bf16.mxu0 0
      %1786 = vmatmul.mubr.bf16.gmra.mrb[0].mxu0 %v707
      %v1787 = vpop.f32.mrb[0].mxu0
      %v1788 = vadd.f32 %v1711, %v1787
      %v1789 = vpop.f32.mrb[0].mxu0
      %v1790 = vpop.f32.mrb[0].mxu0
      %v1791 = vadd.f32 %v1714, %v1790
      %v1792 = vpop.f32.mrb[0].mxu0
      %1793 = vmatprep.mubr.bf16.mxu0 0
      %1794 = vmatmul.mubr.bf16.gmra.mrb[0].mxu0 %v710
      %v1795 = vpop.f32.mrb[0].mxu0
      %v1796 = vadd.f32 %v1719, %v1795
      %v1797 = vpop.f32.mrb[0].mxu0
      %v1798 = vpop.f32.mrb[0].mxu0
      %v1799 = vadd.f32 %v1722, %v1798
      %v1800 = vpop.f32.mrb[0].mxu0
      %1801 = vmatprep.mubr.bf16.mxu0 0
      %1802 = vmatmul.mubr.bf16.gmra.mrb[0].mxu0 %v713
      %v1803 = vpop.f32.mrb[0].mxu0
      %v1804 = vadd.f32 %v1727, %v1803
      %v1805 = vpop.f32.mrb[0].mxu0
      %v1806 = vpop.f32.mrb[0].mxu0
      %v1807 = vadd.f32 %v1730, %v1806
      %v1808 = vpop.f32.mrb[0].mxu0
      %1809 = vdwg.mxu0
      %v1810 = vlaneseq
      %v1811 = vshrl.u32 %v1810, 7
      %v1812 = vsub.s32 0, %v1811
      %v1813 = vrot.slane %v450, %v1812
      %v1814 = vadd.f32 %v1780, %v1813
      %v1815 = vadd.f32 %v1783, %v1813
      %v1816 = vadd.f32 %v1788, %v1813
      %v1817 = vadd.f32 %v1791, %v1813
      %v1818 = vadd.f32 %v1796, %v1813
      %v1819 = vadd.f32 %v1799, %v1813
      %v1820 = vadd.f32 %v1804, %v1813
      %v1821 = vadd.f32 %v1807, %v1813
      %v1822 = vmax.f32 %v1814, 0.0
      %v1823 = vmax.f32 %v1815, 0.0
      %v1824 = vmax.f32 %v1816, 0.0
      %v1825 = vmax.f32 %v1817, 0.0
      %v1826 = vmax.f32 %v1818, 0.0
      %v1827 = vmax.f32 %v1819, 0.0
      %v1828 = vmax.f32 %v1820, 0.0
      %v1829 = vmax.f32 %v1821, 0.0
      %1830 = vst.msk [vmem:[%s413] sm:$0xff] %vm702, %v1822
      %1831 = vst.msk [vmem:[%s413 + $0x8] sm:$0xff] %vm702, %v1823
      %1832 = vst.msk [vmem:[%s413 + $0x10] sm:$0xff] %vm702, %v1824
      %1833 = vst.msk [vmem:[%s413 + $0x18] sm:$0xff] %vm702, %v1825
      %1834 = vst.msk [vmem:[%s413 + $0x20] sm:$0xff] %vm702, %v1826
      %1835 = vst.msk [vmem:[%s413 + $0x28] sm:$0xff] %vm702, %v1827
      %1836 = vst.msk [vmem:[%s413 + $0x30] sm:$0xff] %vm702, %v1828
      %1837 = vst.msk [vmem:[%s413 + $0x38] sm:$0xff] %vm702, %v1829
      %p1838 = scmp.lt.s32.totalorder %s21, 1
      %s1839 = scalar_select %p1838, %s21, 1
      %s1840 = smul.addr %s1839, 8
      %s1841 = smul.addr %s1840, 8
      %s1842 = scalar_lea.vmem %s10, %s1841
      // Predicated region
      $region61: #{tpu_custom_call.1} parent=59 // pred_check
        %p1843 = pneg %p269
      $region62: #{tpu_custom_call.1} parent=59 // pred_check_branch
        %1845 = sbr.rel (%p1843) target = $region64
      $region63: #{tpu_custom_call.1} parent=59 // pred_region
        _
      $region64: #{tpu_custom_call.1} parent=59 // pred_fallthru
        _
    $region60: #{tpu_custom_call.1} parent=5 // pred_fallthru
      _
    %p1846 = scmp.le.s32.totalorder 2, %s16
    // Predicated region
    $region65: #{tpu_custom_call.1} parent=5 // pred_check
      %p1847 = pneg %p1846
    $region66: #{tpu_custom_call.1} parent=5 // pred_check_branch
      %1849 = sbr.rel (%p1847) target = $region68
    $region67: #{tpu_custom_call.1} parent=5 // pred_region
      %s1850 = ssub.s32 %s16, 2
      // Predicated region
      $region69: #{tpu_custom_call.1} parent=67 // pred_check
        %p1851 = pneg %p275
      $region70: #{tpu_custom_call.1} parent=67 // pred_check_branch
        %1853 = sbr.rel (%p1851) target = $region72
      $region71: #{tpu_custom_call.1} parent=67 // pred_region
        %p1854 = scmp.lt.s32.totalorder %s22, 1
        %s1855 = scalar_select %p1854, %s22, 1
        %s1856 = smul.addr %s1855, 8
        %s1857 = smul.addr %s1856, 8
        %s1858 = scalar_lea.vmem %s10, %s1857
      $region72: #{tpu_custom_call.1} parent=67 // pred_fallthru
        _
    $region68: #{tpu_custom_call.1} parent=5 // pred_fallthru
      _
  $region6: #{tpu_custom_call.1} parent=0 // loop_footer
    %s20 = sadd.s32 1, %s16
  $region7: #{tpu_custom_call.1} parent=0 // loop_footer_branch
    %15 = sbr.rel target = $region3
  $region8: #{tpu_custom_call.1} parent=0 // loop_exit
    _

</llo_original>
